<compile_context>
chip_gen: v7x
topology: tpu7x:2x2x1
jax: 0.10.0
libtpu: 0.0.40
codegen_flags: <defaults>
</compile_context>

<pallas_src>
import functools

import numpy as np
import jax
import jax.numpy as jnp
from jax import lax
from jax.experimental import pallas as pl
from jax.experimental.pallas import tpu as pltpu

LANE = 128   # lane (last-dim) padding unit
SUB = 16     # sublane padding unit for the batch axis (covers bf16 packing)


def _ru(x, m):
    return (x + m - 1) // m * m


def _pad(a, shape):
    pads = [(0, s - d) for d, s in zip(a.shape, shape)]
    if all(p == (0, 0) for p in pads):
        return a
    return jnp.pad(a, pads)


def _pick_bb(b):
    """Batch block size: multiple of 16 and >=2 blocks when possible (megacore)."""
    for cand in (256, 128, 64, 32, 16):
        if b % cand == 0 and b // cand >= 2:
            return cand
    return b


# ----------------------------------------------------------------------------
# GRU kernel (fused gates, hoisted input projection, optional mask / topic)
# ----------------------------------------------------------------------------
def _gru_kernel(*refs, masked, want_seq, want_topic, unroll):
    it = iter(refs)
    x_ref = next(it)       # [T, BB, E]   (bf16)
    len_ref = next(it)     # [BB, 1]      int32
    h0_ref = next(it)      # [BB, H]      f32
    wx_ref = next(it)      # [E, 3H]      bf16  (r|z|n)
    wh_ref = next(it)      # [H, 3H]      bf16  (r|z|n)
    bx_ref = next(it)      # [1, 3H]      f32   (bx_r+bh_r | bx_z+bh_z | bx_n)
    bhn_ref = next(it)     # [1, H]       f32
    out_seq_ref = next(it) if want_seq else None    # [T, BB, H] bf16
    hT_ref = next(it)                               # [BB, H]    f32
    topic_ref = next(it) if want_topic else None    # [BB, H]    f32
    gx_ref = next(it)                               # scratch [T, BB, 3H] f32

    T, BB, E = x_ref.shape
    H = h0_ref.shape[-1]

    # ---- hoisted input projection: ONE big MXU GEMM (bf16 x bf16 -> f32) ----
    x2d = x_ref[...].reshape(T * BB, E).astype(jnp.bfloat16)
    gx = jnp.dot(x2d, wx_ref[...], preferred_element_type=jnp.float32)
    gx = gx + bx_ref[...]                       # r/z biases already include bh
    gx_ref[...] = gx.reshape(T, BB, 3 * H)

    wh = wh_ref[...]
    bhn_b = jnp.broadcast_to(bhn_ref[...], (BB, H))   # hoisted broadcast
    lens = len_ref[...] if masked else None           # [BB, 1] int32

    def step(t, carry):
        if want_topic:
            h, acc = carry
        else:
            h, acc = carry, None
        gx_t = gx_ref[t]                                           # [BB, 3H]
        gh = jnp.dot(h.astype(jnp.bfloat16), wh,
                     preferred_element_type=jnp.float32)           # [BB, 3H]
        r = jax.nn.sigmoid(gx_t[:, 0 * H:1 * H] + gh[:, 0 * H:1 * H])
        z = jax.nn.sigmoid(gx_t[:, 1 * H:2 * H] + gh[:, 1 * H:2 * H])
        n = jnp.tanh(gx_t[:, 2 * H:3 * H] + r * (gh[:, 2 * H:3 * H] + bhn_b))
        h_new = (1.0 - z) * n + z * h
        if masked:
            mask = lens > t                                        # [BB, 1]
            h_out = jnp.where(mask, h_new, 0.0)
            h_next = jnp.where(mask, h_new, h)
        else:
            h_out = h_new
            h_next = h_new
        if want_seq:
            out_seq_ref[t] = h_out.astype(out_seq_ref.dtype)
        if want_topic:
            acc = acc + h_out
            return (h_next, acc)
        return h_next

    h0 = h0_ref[...]
    if want_topic:
        hT, acc = lax.fori_loop(0, T, step, (h0, jnp.zeros_like(h0)),
                                unroll=unroll)
        denom = jnp.maximum(lens.astype(jnp.float32), 1.0)   # guard len == 0
        topic_ref[...] = acc / denom
    else:
        hT = lax.fori_loop(0, T, step, h0, unroll=unroll)
    hT_ref[...] = hT


def gru_forward(x_tbe, lengths, h0, wx, wh, bx, bhn, *, masked=True,
                want_seq=True, want_topic=False, unroll=2,
                out_seq_dtype=jnp.bfloat16):
    """x_tbe: [T, B, E] (bf16), lengths: [B] int32, h0: [B, H] f32."""
    assert masked or not want_topic
    T, B, E = x_tbe.shape
    H = h0.shape[1]
    BB = _pick_bb(B)
    grid = (B // BB,)

    kern = functools.partial(_gru_kernel, masked=masked, want_seq=want_seq,
                             want_topic=want_topic, unroll=unroll)

    in_specs = [
        pl.BlockSpec((T, BB, E), lambda b: (0, b, 0)),      # x
        pl.BlockSpec((BB, 1), lambda b: (b, 0)),            # lengths
        pl.BlockSpec((BB, H), lambda b: (b, 0)),            # h0
        pl.BlockSpec((E, 3 * H), lambda b: (0, 0)),         # wx (fused)
        pl.BlockSpec((H, 3 * H), lambda b: (0, 0)),         # wh (fused)
        pl.BlockSpec((1, 3 * H), lambda b: (0, 0)),         # bx (pre-summed r/z)
        pl.BlockSpec((1, H), lambda b: (0, 0)),             # bh_n
    ]
    out_shapes, out_specs = [], []
    if want_seq:
        out_shapes.append(jax.ShapeDtypeStruct((T, B, H), out_seq_dtype))
        out_specs.append(pl.BlockSpec((T, BB, H), lambda b: (0, b, 0)))
    out_shapes.append(jax.ShapeDtypeStruct((B, H), jnp.float32))
    out_specs.append(pl.BlockSpec((BB, H), lambda b: (b, 0)))
    if want_topic:
        out_shapes.append(jax.ShapeDtypeStruct((B, H), jnp.float32))
        out_specs.append(pl.BlockSpec((BB, H), lambda b: (b, 0)))

    outs = pl.pallas_call(
        kern,
        out_shape=tuple(out_shapes),
        grid_spec=pltpu.PrefetchScalarGridSpec(
            num_scalar_prefetch=0, grid=grid,
            in_specs=in_specs, out_specs=tuple(out_specs),
            scratch_shapes=[pltpu.VMEM((T, BB, 3 * H), jnp.float32)]),
        compiler_params=pltpu.CompilerParams(
            dimension_semantics=("parallel",),
            vmem_limit_bytes=48 * 1024 * 1024),
    )(x_tbe, lengths.reshape(B, 1).astype(jnp.int32), h0, wx, wh, bx, bhn)

    i = 0
    out_seq = None
    if want_seq:
        out_seq = outs[i]; i += 1
    hT = outs[i]; i += 1
    topic = outs[i] if want_topic else None
    return out_seq, hT, topic


# ----------------------------------------------------------------------------
# Tiled linear:  o = x @ w + b   (bf16 operands, f32 accumulation, pipelined)
# ----------------------------------------------------------------------------
def _matmul_kernel(x_ref, w_ref, b_ref, o_ref, acc_ref):
    @pl.when(pl.program_id(2) == 0)
    def _():
        acc_ref[...] = jnp.zeros_like(acc_ref)
    acc_ref[...] += jnp.dot(x_ref[...], w_ref[...],
                            preferred_element_type=jnp.float32)
    @pl.when(pl.program_id(2) == pl.num_programs(2) - 1)
    def _():
        o_ref[...] = (acc_ref[...] + b_ref[...]).astype(o_ref.dtype)


def linear_forward(x, w, b, *, out_dtype=jnp.float32, tm=256, tn=512, tk=512):
    M, K = x.shape
    _, N = w.shape
    tm = min(tm, _ru(M, 8))
    tn = min(tn, _ru(N, LANE))
    tk = min(tk, _ru(K, LANE))
    Mp, Kp, Np = _ru(M, tm), _ru(K, tk), _ru(N, tn)
    xp = _pad(x, (Mp, Kp))
    wp = _pad(w, (Kp, Np))
    bp = _pad(b, (1, Np))
    out = pl.pallas_call(
        _matmul_kernel,
        out_shape=jax.ShapeDtypeStruct((Mp, Np), out_dtype),
        grid_spec=pltpu.PrefetchScalarGridSpec(
            num_scalar_prefetch=0, grid=(Mp // tm, Np // tn, Kp // tk),
            in_specs=[pl.BlockSpec((tm, tk), lambda i, j, k: (i, k)),
                      pl.BlockSpec((tk, tn), lambda i, j, k: (k, j)),
                      pl.BlockSpec((1, tn), lambda i, j, k: (0, j))],
            out_specs=pl.BlockSpec((tm, tn), lambda i, j, k: (i, j)),
            scratch_shapes=[pltpu.VMEM((tm, tn), jnp.float32)]),
        compiler_params=pltpu.CompilerParams(
            dimension_semantics=("parallel", "parallel", "arbitrary"),
            vmem_limit_bytes=48 * 1024 * 1024),
    )(xp, wp, bp)
    return out[:M, :N]


# ----------------------------------------------------------------------------
# Parameters: logical init + fuse/pad/cast for the TPU kernels
# ----------------------------------------------------------------------------
def _normal(key, shape, scale=0.1):
    return scale * jax.random.normal(key, shape, dtype=jnp.float32)


def init_params(key, vocab, embed, h_enc, h_ctx, h_dec, n_layers_dec):
    ks = iter(jax.random.split(key, 32))
    p = {"embedding": _normal(next(ks), (vocab, embed))}

    def gru(e, h):
        return dict(wx=_normal(next(ks), (3, e, h)),
                    wh=_normal(next(ks), (3, h, h)),
                    bx=_normal(next(ks), (3, 1, h)),
                    bh=_normal(next(ks), (3, 1, h)))

    p["encoder"] = gru(embed, h_enc)
    p["context"] = gru(h_enc, h_ctx)
    p["decoder"] = gru(embed, h_dec)
    p["c2d_w"] = _normal(next(ks), (h_ctx, n_layers_dec * h_dec))
    p["c2d_b"] = _normal(next(ks), (1, n_layers_dec * h_dec))
    p["out_w"] = _normal(next(ks), (h_dec + h_enc, vocab))
    p["out_b"] = _normal(next(ks), (1, vocab))
    return p


def prepare_params(raw, vocab, embed, h_enc, h_ctx, h_dec, n_layers_dec):
    ep, hep, hcp, hdp, vp = (_ru(embed, LANE), _ru(h_enc, LANE),
                             _ru(h_ctx, LANE), _ru(h_dec, LANE),
                             _ru(vocab, LANE))

    def fuse_gru(g, ep_, hp_):
        wx = jnp.concatenate([_pad(g["wx"][i], (ep_, hp_)) for i in range(3)], 1)
        wh = jnp.concatenate([_pad(g["wh"][i], (hp_, hp_)) for i in range(3)], 1)
        bx = jnp.concatenate([_pad(g["bx"][0] + g["bh"][0], (1, hp_)),
                              _pad(g["bx"][1] + g["bh"][1], (1, hp_)),
                              _pad(g["bx"][2], (1, hp_))], 1)
        bhn = _pad(g["bh"][2], (1, hp_))
        return dict(wx=wx.astype(jnp.bfloat16), wh=wh.astype(jnp.bfloat16),
                    bx=bx.astype(jnp.float32), bhn=bhn.astype(jnp.float32))

    p = {"embedding": _pad(raw["embedding"], (vocab, ep)).astype(jnp.bfloat16),
         "encoder": fuse_gru(raw["encoder"], ep, hep),
         "context": fuse_gru(raw["context"], hep, hcp),
         "decoder": fuse_gru(raw["decoder"], ep, hdp)}

    wblk, bblk = [], []
    for l in range(n_layers_dec):
        wblk.append(_pad(raw["c2d_w"][:, l * h_dec:(l + 1) * h_dec], (hcp, hdp)))
        bblk.append(_pad(raw["c2d_b"][:, l * h_dec:(l + 1) * h_dec], (1, hdp)))
    p["c2d_w"] = jnp.concatenate(wblk, 1).astype(jnp.bfloat16)
    p["c2d_b"] = jnp.concatenate(bblk, 1).astype(jnp.float32)

    p["out_w"] = jnp.concatenate(
        [_pad(raw["out_w"][:h_dec], (hdp, vp)),
         _pad(raw["out_w"][h_dec:], (hep, vp))], 0).astype(jnp.bfloat16)
    p["out_b"] = _pad(raw["out_b"], (1, vp)).astype(jnp.float32)

    p["dims"] = dict(vocab=vocab, embed=embed, h_enc=h_enc, h_ctx=h_ctx,
                     h_dec=h_dec, n_layers_dec=n_layers_dec,
                     ep=ep, hep=hep, hcp=hcp, hdp=hdp, vp=vp)
    return p


# ----------------------------------------------------------------------------
# TDCM forward
# ----------------------------------------------------------------------------
def tdcm_forward(params, input_sentences, input_lengths, input_turns,
                 target_sentences, *, decode=False):
    """input_turns is a Python list of ints (conversation lengths)."""
    d = params["dims"]
    V, Ep, Hep, Hcp, Hdp, Vp = (d["vocab"], d["ep"], d["hep"], d["hcp"],
                                d["hdp"], d["vp"])
    B, Tu = input_sentences.shape
    Bp = _ru(B, SUB)

    # ---- utterance encoder (topic fused; no [T,B,H] writeback) --------------
    emb = jnp.take(params["embedding"], input_sentences, axis=0)    # [B,Tu,Ep]
    emb = _pad(jnp.transpose(emb, (1, 0, 2)), (Tu, Bp, Ep))
    lens = _pad(input_lengths.astype(jnp.int32), (Bp,))
    _, enc_hT, topic = gru_forward(
        emb, lens, jnp.zeros((Bp, Hep), jnp.float32), **params["encoder"],
        masked=True, want_seq=False, want_topic=True, unroll=True)

    # ---- pack utterances into padded conversations (one gather) -------------
    num_convs = len(input_turns)
    max_turn = max(input_turns)
    starts = np.concatenate([[0], np.cumsum(input_turns[:-1])]).astype(np.int64)
    gather_idx = np.zeros((num_convs, max_turn), np.int32)
    for c, (s, l) in enumerate(zip(starts, input_turns)):
        gather_idx[c, :l] = np.arange(s, s + l)
    Cp = _ru(num_convs, SUB)
    conv = jnp.take(enc_hT.astype(jnp.bfloat16),
                    jnp.asarray(gather_idx.reshape(-1)), axis=0)
    conv = _pad(conv.reshape(num_convs, max_turn, Hep), (Cp, max_turn, Hep))
    turns = _pad(jnp.asarray(np.asarray(input_turns, np.int32)), (Cp,))

    # ---- context encoder -----------------------------------------------------
    ctx_out, _, _ = gru_forward(
        jnp.transpose(conv, (1, 0, 2)), turns,
        jnp.zeros((Cp, Hcp), jnp.float32), **params["context"],
        masked=True, want_seq=True, want_topic=False, unroll=True)
    # un-pad back to one row per sentence (one gather)
    flat_idx = np.concatenate(
        [c * max_turn + np.arange(l)
         for c, l in enumerate(input_turns)]).astype(np.int32)
    ctx_flat = jnp.take(
        jnp.transpose(ctx_out, (1, 0, 2)).reshape(Cp * max_turn, Hcp),
        jnp.asarray(flat_idx), axis=0)
    ctx_flat = _pad(ctx_flat, (Bp, Hcp))                     # [Bp, Hcp] bf16

    # ---- context2decoder (tiled matmul) --------------------------------------
    dec_init = linear_forward(ctx_flat, params["c2d_w"], params["c2d_b"],
                              out_dtype=jnp.float32)         # [Bp, L*Hdp]
    # TODO(synk): only a single-layer decoder GRU is implemented; layers > 0 of
    # the context2decoder output are computed (as in the reference) but unused.
    h0_dec = dec_init[:, :Hdp]

    # ---- decoder (teacher forcing, mask-free GRU) -----------------------------
    tgt = jnp.take(params["embedding"], target_sentences, axis=0)   # [B,Tt,Ep]
    Tt = tgt.shape[1]
    tgt = _pad(jnp.transpose(tgt, (1, 0, 2)), (Tt, Bp, Ep))
    full_len = jnp.full((Bp,), Tt, jnp.int32)
    dec_out, _, _ = gru_forward(tgt, full_len, h0_dec, **params["decoder"],
                                masked=False, want_seq=True, want_topic=False,
                                unroll=2)                    # [Tt,Bp,Hdp] bf16

    # ---- vocab projection (tiled, bf16 operands, f32 accumulate) --------------
    topic_b = jnp.broadcast_to(topic.astype(jnp.bfloat16)[None], (Tt, Bp, Hep))
    feats = jnp.concatenate([dec_out, topic_b], axis=-1)     # [Tt,Bp,Hdp+Hep]
    logits = linear_forward(feats.reshape(Tt * Bp, Hdp + Hep),
                            params["out_w"], params["out_b"],
                            out_dtype=jnp.float32)
    logits = logits.reshape(Tt, Bp, Vp)[:, :B, :V]           # strip padding
    decoder_outputs = jnp.transpose(logits, (1, 0, 2))       # [B, Tt, V]

    if not decode:
        return decoder_outputs
    # eval path: greedy argmax tokens, shaped [B, 1, Tt] (matches unsqueeze(1))
    # TODO(synk): beam_decode (dead code after `return` in the reference) not ported.
    return jnp.argmax(decoder_outputs, axis=-1)[:, None, :]


# ----------------------------------------------------------------------------
if __name__ == "__main__":
    key = jax.random.PRNGKey(0)
    k_tok, k_tgt, k_par = jax.random.split(key, 3)

    vocab, embed = 32, 16
    h_enc = h_ctx = h_dec = 32
    n_layers_dec = 1
    max_utt_len = 8
    input_turns = [3, 2]                 # two conversations: 3 + 2 utterances
    num_sentences = sum(input_turns)     # 5

    input_sentences = jax.random.randint(
        k_tok, (num_sentences, max_utt_len), 0, vocab, dtype=jnp.int32)
    target_sentences = jax.random.randint(
        k_tgt, (num_sentences, max_utt_len), 0, vocab, dtype=jnp.int32)
    input_lengths = jnp.array([8, 5, 7, 6, 8], dtype=jnp.int32)

    raw = init_params(k_par, vocab, embed, h_enc, h_ctx, h_dec, n_layers_dec)
    params = prepare_params(raw, vocab, embed, h_enc, h_ctx, h_dec,
                            n_layers_dec)

    out = tdcm_forward(params, input_sentences, input_lengths, input_turns,
                       target_sentences, decode=False)
    out = jax.block_until_ready(out)
    assert out.shape == (num_sentences, max_utt_len, vocab), out.shape
    assert bool(jnp.isfinite(out).all())
    print("KERNEL_OK")
</pallas_src>

<mosaic_0001>
module attributes {stable_mosaic.version = 11 : i64} {
  func.func @_gru_kernel(%arg0: i32, %arg1: memref<8x16x128xbf16, #tpu.memory_space<vmem>>, %arg2: memref<16x1xi32, #tpu.memory_space<vmem>>, %arg3: memref<16x128xf32, #tpu.memory_space<vmem>>, %arg4: memref<128x384xbf16, #tpu.memory_space<vmem>>, %arg5: memref<128x384xbf16, #tpu.memory_space<vmem>>, %arg6: memref<1x384xf32, #tpu.memory_space<vmem>>, %arg7: memref<1x128xf32, #tpu.memory_space<vmem>>, %arg8: memref<16x128xf32, #tpu.memory_space<vmem>>, %arg9: memref<16x128xf32, #tpu.memory_space<vmem>>, %arg10: memref<8x16x384xf32, #tpu.memory_space<vmem>>) attributes {dimension_semantics = [#tpu.dimension_semantics<parallel>], iteration_bounds = array<i64: 1>, scalar_prefetch = 0 : i64, scratch_operands = 1 : i64, tpu.core_type = #tpu.core_type<tc>, window_params = [{transform_indices = @transform_0, window_bounds = array<i64: 8, 16, 128>}, {transform_indices = @transform_1, window_bounds = array<i64: 16, 1>}, {transform_indices = @transform_2, window_bounds = array<i64: 16, 128>}, {pipeline_mode = #tpu.pipeline_mode<synchronous>, transform_indices = @transform_3, window_bounds = array<i64: 128, 384>}, {pipeline_mode = #tpu.pipeline_mode<synchronous>, transform_indices = @transform_4, window_bounds = array<i64: 128, 384>}, {pipeline_mode = #tpu.pipeline_mode<synchronous>, transform_indices = @transform_5, window_bounds = array<i64: 1, 384>}, {pipeline_mode = #tpu.pipeline_mode<synchronous>, transform_indices = @transform_6, window_bounds = array<i64: 1, 128>}, {transform_indices = @transform_7, window_bounds = array<i64: 16, 128>}, {transform_indices = @transform_8, window_bounds = array<i64: 16, 128>}]} {
    %c0 = arith.constant 0 : index
    %c0_0 = arith.constant 0 : index
    %c0_1 = arith.constant 0 : index
    %0 = vector.load %arg1[%c0, %c0_0, %c0_1] : memref<8x16x128xbf16, #tpu.memory_space<vmem>>, vector<8x16x128xbf16>
    %1 = vector.shape_cast %0 : vector<8x16x128xbf16> to vector<128x128xbf16>
    %c0_2 = arith.constant 0 : index
    %c0_3 = arith.constant 0 : index
    %2 = vector.load %arg4[%c0_2, %c0_3] : memref<128x384xbf16, #tpu.memory_space<vmem>>, vector<128x384xbf16>
    %cst = arith.constant dense<0.000000e+00> : vector<128x384xf32>
    %3 = tpu.matmul %1, %2, %cst {dimension_numbers = #tpu.dot_dimension_numbers<[1], [0], [0], [1], [0, 0, 1, 1], [], []>} : vector<128x128xbf16>, vector<128x384xbf16>, vector<128x384xf32> -> vector<128x384xf32>
    %c0_4 = arith.constant 0 : index
    %c0_5 = arith.constant 0 : index
    %4 = vector.load %arg6[%c0_4, %c0_5] : memref<1x384xf32, #tpu.memory_space<vmem>>, vector<1x384xf32>
    %5 = vector.broadcast %4 : vector<1x384xf32> to vector<128x384xf32>
    %6 = arith.addf %3, %5 : vector<128x384xf32>
    %7 = vector.shape_cast %6 : vector<128x384xf32> to vector<8x16x384xf32>
    %c0_6 = arith.constant 0 : index
    %c0_7 = arith.constant 0 : index
    %c0_8 = arith.constant 0 : index
    %8 = vector.load %arg10[%c0_6, %c0_7, %c0_8] : memref<8x16x384xf32, #tpu.memory_space<vmem>>, vector<8x16x384xf32>
    tpu.vector_store %arg10[%c0_6, %c0_7, %c0_8], %7 {strides = array<i32>} : memref<8x16x384xf32, #tpu.memory_space<vmem>>, vector<8x16x384xf32>,
    %c0_9 = arith.constant 0 : index
    %c0_10 = arith.constant 0 : index
    %9 = vector.load %arg5[%c0_9, %c0_10] : memref<128x384xbf16, #tpu.memory_space<vmem>>, vector<128x384xbf16>
    %c0_11 = arith.constant 0 : index
    %c0_12 = arith.constant 0 : index
    %10 = vector.load %arg7[%c0_11, %c0_12] : memref<1x128xf32, #tpu.memory_space<vmem>>, vector<1x128xf32>
    %11 = vector.shape_cast %10 : vector<1x128xf32> to vector<1x128xf32>
    %12 = vector.broadcast %11 : vector<1x128xf32> to vector<16x128xf32>
    %c0_13 = arith.constant 0 : index
    %c0_14 = arith.constant 0 : index
    %13 = vector.load %arg2[%c0_13, %c0_14] : memref<16x1xi32, #tpu.memory_space<vmem>>, vector<16x1xi32>
    %c0_15 = arith.constant 0 : index
    %c0_16 = arith.constant 0 : index
    %14 = vector.load %arg3[%c0_15, %c0_16] : memref<16x128xf32, #tpu.memory_space<vmem>>, vector<16x128xf32>
    %cst_17 = arith.constant 0.000000e+00 : f32
    %15 = vector.broadcast %cst_17 : f32 to vector<16x128xf32>
    %c0_i32 = arith.constant 0 : i32
    %16 = arith.index_cast %c0_i32 : i32 to index
    %c0_18 = arith.constant 0 : index
    %c0_19 = arith.constant 0 : index
    %17 = vector.load %arg10[%16, %c0_18, %c0_19] : memref<8x16x384xf32, #tpu.memory_space<vmem>>, vector<1x16x384xf32>
    %18 = vector.shape_cast %17 : vector<1x16x384xf32> to vector<16x384xf32>
    %19 = arith.truncf %14 : vector<16x128xf32> to vector<16x128xbf16>
    %cst_20 = arith.constant dense<0.000000e+00> : vector<16x384xf32>
    %20 = tpu.matmul %19, %9, %cst_20 {dimension_numbers = #tpu.dot_dimension_numbers<[1], [0], [0], [1], [0, 0, 1, 1], [], []>} : vector<16x128xbf16>, vector<128x384xbf16>, vector<16x384xf32> -> vector<16x384xf32>
    %21 = vector.extract_strided_slice %18 {offsets = [0, 0], sizes = [16, 128], strides = [1, 1]} : vector<16x384xf32> to vector<16x128xf32>
    %22 = vector.extract_strided_slice %20 {offsets = [0, 0], sizes = [16, 128], strides = [1, 1]} : vector<16x384xf32> to vector<16x128xf32>
    %23 = arith.addf %21, %22 : vector<16x128xf32>
    %24 = arith.negf %23 : vector<16x128xf32>
    %25 = math.exp %24 : vector<16x128xf32>
    %cst_21 = arith.constant 1.000000e+00 : f32
    %26 = vector.broadcast %cst_21 : f32 to vector<16x128xf32>
    %27 = arith.addf %26, %25 : vector<16x128xf32>
    %28 = arith.divf %26, %27 : vector<16x128xf32>
    %29 = vector.extract_strided_slice %18 {offsets = [0, 128], sizes = [16, 128], strides = [1, 1]} : vector<16x384xf32> to vector<16x128xf32>
    %30 = vector.extract_strided_slice %20 {offsets = [0, 128], sizes = [16, 128], strides = [1, 1]} : vector<16x384xf32> to vector<16x128xf32>
    %31 = arith.addf %29, %30 : vector<16x128xf32>
    %32 = arith.negf %31 : vector<16x128xf32>
    %33 = math.exp %32 : vector<16x128xf32>
    %cst_22 = arith.constant 1.000000e+00 : f32
    %34 = vector.broadcast %cst_22 : f32 to vector<16x128xf32>
    %35 = arith.addf %34, %33 : vector<16x128xf32>
    %36 = arith.divf %34, %35 : vector<16x128xf32>
    %37 = vector.extract_strided_slice %18 {offsets = [0, 256], sizes = [16, 128], strides = [1, 1]} : vector<16x384xf32> to vector<16x128xf32>
    %38 = vector.extract_strided_slice %20 {offsets = [0, 256], sizes = [16, 128], strides = [1, 1]} : vector<16x384xf32> to vector<16x128xf32>
    %39 = arith.addf %38, %12 : vector<16x128xf32>
    %40 = arith.mulf %28, %39 : vector<16x128xf32>
    %41 = arith.addf %37, %40 : vector<16x128xf32>
    %42 = math.tanh %41 : vector<16x128xf32>
    %cst_23 = arith.constant 1.000000e+00 : f32
    %43 = vector.broadcast %cst_23 : f32 to vector<16x128xf32>
    %44 = arith.subf %43, %36 : vector<16x128xf32>
    %45 = arith.mulf %44, %42 : vector<16x128xf32>
    %46 = arith.mulf %36, %14 : vector<16x128xf32>
    %47 = arith.addf %45, %46 : vector<16x128xf32>
    %48 = vector.broadcast %c0_i32 : i32 to vector<16x1xi32>
    %49 = arith.cmpi sgt, %13, %48 : vector<16x1xi32>
    %cst_24 = arith.constant 0.000000e+00 : f32
    %50 = vector.shape_cast %49 : vector<16x1xi1> to vector<16x1xi1>
    %51 = vector.broadcast %50 : vector<16x1xi1> to vector<16x128xi1>
    %52 = vector.broadcast %cst_24 : f32 to vector<16x128xf32>
    %53 = arith.select %51, %47, %52 : vector<16x128xi1>, vector<16x128xf32>
    %54 = vector.shape_cast %49 : vector<16x1xi1> to vector<16x1xi1>
    %55 = vector.broadcast %54 : vector<16x1xi1> to vector<16x128xi1>
    %56 = arith.select %55, %47, %14 : vector<16x128xi1>, vector<16x128xf32>
    %57 = arith.addf %15, %53 : vector<16x128xf32>
    %c1_i32 = arith.constant 1 : i32
    %58 = arith.index_cast %c1_i32 : i32 to index
    %c0_25 = arith.constant 0 : index
    %c0_26 = arith.constant 0 : index
    %59 = vector.load %arg10[%58, %c0_25, %c0_26] : memref<8x16x384xf32, #tpu.memory_space<vmem>>, vector<1x16x384xf32>
    %60 = vector.shape_cast %59 : vector<1x16x384xf32> to vector<16x384xf32>
    %61 = arith.truncf %56 : vector<16x128xf32> to vector<16x128xbf16>
    %cst_27 = arith.constant dense<0.000000e+00> : vector<16x384xf32>
    %62 = tpu.matmul %61, %9, %cst_27 {dimension_numbers = #tpu.dot_dimension_numbers<[1], [0], [0], [1], [0, 0, 1, 1], [], []>} : vector<16x128xbf16>, vector<128x384xbf16>, vector<16x384xf32> -> vector<16x384xf32>
    %63 = vector.extract_strided_slice %60 {offsets = [0, 0], sizes = [16, 128], strides = [1, 1]} : vector<16x384xf32> to vector<16x128xf32>
    %64 = vector.extract_strided_slice %62 {offsets = [0, 0], sizes = [16, 128], strides = [1, 1]} : vector<16x384xf32> to vector<16x128xf32>
    %65 = arith.addf %63, %64 : vector<16x128xf32>
    %66 = arith.negf %65 : vector<16x128xf32>
    %67 = math.exp %66 : vector<16x128xf32>
    %cst_28 = arith.constant 1.000000e+00 : f32
    %68 = vector.broadcast %cst_28 : f32 to vector<16x128xf32>
    %69 = arith.addf %68, %67 : vector<16x128xf32>
    %70 = arith.divf %68, %69 : vector<16x128xf32>
    %71 = vector.extract_strided_slice %60 {offsets = [0, 128], sizes = [16, 128], strides = [1, 1]} : vector<16x384xf32> to vector<16x128xf32>
    %72 = vector.extract_strided_slice %62 {offsets = [0, 128], sizes = [16, 128], strides = [1, 1]} : vector<16x384xf32> to vector<16x128xf32>
    %73 = arith.addf %71, %72 : vector<16x128xf32>
    %74 = arith.negf %73 : vector<16x128xf32>
    %75 = math.exp %74 : vector<16x128xf32>
    %cst_29 = arith.constant 1.000000e+00 : f32
    %76 = vector.broadcast %cst_29 : f32 to vector<16x128xf32>
    %77 = arith.addf %76, %75 : vector<16x128xf32>
    %78 = arith.divf %76, %77 : vector<16x128xf32>
    %79 = vector.extract_strided_slice %60 {offsets = [0, 256], sizes = [16, 128], strides = [1, 1]} : vector<16x384xf32> to vector<16x128xf32>
    %80 = vector.extract_strided_slice %62 {offsets = [0, 256], sizes = [16, 128], strides = [1, 1]} : vector<16x384xf32> to vector<16x128xf32>
    %81 = arith.addf %80, %12 : vector<16x128xf32>
    %82 = arith.mulf %70, %81 : vector<16x128xf32>
    %83 = arith.addf %79, %82 : vector<16x128xf32>
    %84 = math.tanh %83 : vector<16x128xf32>
    %cst_30 = arith.constant 1.000000e+00 : f32
    %85 = vector.broadcast %cst_30 : f32 to vector<16x128xf32>
    %86 = arith.subf %85, %78 : vector<16x128xf32>
    %87 = arith.mulf %86, %84 : vector<16x128xf32>
    %88 = arith.mulf %78, %56 : vector<16x128xf32>
    %89 = arith.addf %87, %88 : vector<16x128xf32>
    %90 = vector.broadcast %c1_i32 : i32 to vector<16x1xi32>
    %91 = arith.cmpi sgt, %13, %90 : vector<16x1xi32>
    %cst_31 = arith.constant 0.000000e+00 : f32
    %92 = vector.shape_cast %91 : vector<16x1xi1> to vector<16x1xi1>
    %93 = vector.broadcast %92 : vector<16x1xi1> to vector<16x128xi1>
    %94 = vector.broadcast %cst_31 : f32 to vector<16x128xf32>
    %95 = arith.select %93, %89, %94 : vector<16x128xi1>, vector<16x128xf32>
    %96 = vector.shape_cast %91 : vector<16x1xi1> to vector<16x1xi1>
    %97 = vector.broadcast %96 : vector<16x1xi1> to vector<16x128xi1>
    %98 = arith.select %97, %89, %56 : vector<16x128xi1>, vector<16x128xf32>
    %99 = arith.addf %57, %95 : vector<16x128xf32>
    %c2_i32 = arith.constant 2 : i32
    %100 = arith.index_cast %c2_i32 : i32 to index
    %c0_32 = arith.constant 0 : index
    %c0_33 = arith.constant 0 : index
    %101 = vector.load %arg10[%100, %c0_32, %c0_33] : memref<8x16x384xf32, #tpu.memory_space<vmem>>, vector<1x16x384xf32>
    %102 = vector.shape_cast %101 : vector<1x16x384xf32> to vector<16x384xf32>
    %103 = arith.truncf %98 : vector<16x128xf32> to vector<16x128xbf16>
    %cst_34 = arith.constant dense<0.000000e+00> : vector<16x384xf32>
    %104 = tpu.matmul %103, %9, %cst_34 {dimension_numbers = #tpu.dot_dimension_numbers<[1], [0], [0], [1], [0, 0, 1, 1], [], []>} : vector<16x128xbf16>, vector<128x384xbf16>, vector<16x384xf32> -> vector<16x384xf32>
    %105 = vector.extract_strided_slice %102 {offsets = [0, 0], sizes = [16, 128], strides = [1, 1]} : vector<16x384xf32> to vector<16x128xf32>
    %106 = vector.extract_strided_slice %104 {offsets = [0, 0], sizes = [16, 128], strides = [1, 1]} : vector<16x384xf32> to vector<16x128xf32>
    %107 = arith.addf %105, %106 : vector<16x128xf32>
    %108 = arith.negf %107 : vector<16x128xf32>
    %109 = math.exp %108 : vector<16x128xf32>
    %cst_35 = arith.constant 1.000000e+00 : f32
    %110 = vector.broadcast %cst_35 : f32 to vector<16x128xf32>
    %111 = arith.addf %110, %109 : vector<16x128xf32>
    %112 = arith.divf %110, %111 : vector<16x128xf32>
    %113 = vector.extract_strided_slice %102 {offsets = [0, 128], sizes = [16, 128], strides = [1, 1]} : vector<16x384xf32> to vector<16x128xf32>
    %114 = vector.extract_strided_slice %104 {offsets = [0, 128], sizes = [16, 128], strides = [1, 1]} : vector<16x384xf32> to vector<16x128xf32>
    %115 = arith.addf %113, %114 : vector<16x128xf32>
    %116 = arith.negf %115 : vector<16x128xf32>
    %117 = math.exp %116 : vector<16x128xf32>
    %cst_36 = arith.constant 1.000000e+00 : f32
    %118 = vector.broadcast %cst_36 : f32 to vector<16x128xf32>
    %119 = arith.addf %118, %117 : vector<16x128xf32>
    %120 = arith.divf %118, %119 : vector<16x128xf32>
    %121 = vector.extract_strided_slice %102 {offsets = [0, 256], sizes = [16, 128], strides = [1, 1]} : vector<16x384xf32> to vector<16x128xf32>
    %122 = vector.extract_strided_slice %104 {offsets = [0, 256], sizes = [16, 128], strides = [1, 1]} : vector<16x384xf32> to vector<16x128xf32>
    %123 = arith.addf %122, %12 : vector<16x128xf32>
    %124 = arith.mulf %112, %123 : vector<16x128xf32>
    %125 = arith.addf %121, %124 : vector<16x128xf32>
    %126 = math.tanh %125 : vector<16x128xf32>
    %cst_37 = arith.constant 1.000000e+00 : f32
    %127 = vector.broadcast %cst_37 : f32 to vector<16x128xf32>
    %128 = arith.subf %127, %120 : vector<16x128xf32>
    %129 = arith.mulf %128, %126 : vector<16x128xf32>
    %130 = arith.mulf %120, %98 : vector<16x128xf32>
    %131 = arith.addf %129, %130 : vector<16x128xf32>
    %132 = vector.broadcast %c2_i32 : i32 to vector<16x1xi32>
    %133 = arith.cmpi sgt, %13, %132 : vector<16x1xi32>
    %cst_38 = arith.constant 0.000000e+00 : f32
    %134 = vector.shape_cast %133 : vector<16x1xi1> to vector<16x1xi1>
    %135 = vector.broadcast %134 : vector<16x1xi1> to vector<16x128xi1>
    %136 = vector.broadcast %cst_38 : f32 to vector<16x128xf32>
    %137 = arith.select %135, %131, %136 : vector<16x128xi1>, vector<16x128xf32>
    %138 = vector.shape_cast %133 : vector<16x1xi1> to vector<16x1xi1>
    %139 = vector.broadcast %138 : vector<16x1xi1> to vector<16x128xi1>
    %140 = arith.select %139, %131, %98 : vector<16x128xi1>, vector<16x128xf32>
    %141 = arith.addf %99, %137 : vector<16x128xf32>
    %c3_i32 = arith.constant 3 : i32
    %142 = arith.index_cast %c3_i32 : i32 to index
    %c0_39 = arith.constant 0 : index
    %c0_40 = arith.constant 0 : index
    %143 = vector.load %arg10[%142, %c0_39, %c0_40] : memref<8x16x384xf32, #tpu.memory_space<vmem>>, vector<1x16x384xf32>
    %144 = vector.shape_cast %143 : vector<1x16x384xf32> to vector<16x384xf32>
    %145 = arith.truncf %140 : vector<16x128xf32> to vector<16x128xbf16>
    %cst_41 = arith.constant dense<0.000000e+00> : vector<16x384xf32>
    %146 = tpu.matmul %145, %9, %cst_41 {dimension_numbers = #tpu.dot_dimension_numbers<[1], [0], [0], [1], [0, 0, 1, 1], [], []>} : vector<16x128xbf16>, vector<128x384xbf16>, vector<16x384xf32> -> vector<16x384xf32>
    %147 = vector.extract_strided_slice %144 {offsets = [0, 0], sizes = [16, 128], strides = [1, 1]} : vector<16x384xf32> to vector<16x128xf32>
    %148 = vector.extract_strided_slice %146 {offsets = [0, 0], sizes = [16, 128], strides = [1, 1]} : vector<16x384xf32> to vector<16x128xf32>
    %149 = arith.addf %147, %148 : vector<16x128xf32>
    %150 = arith.negf %149 : vector<16x128xf32>
    %151 = math.exp %150 : vector<16x128xf32>
    %cst_42 = arith.constant 1.000000e+00 : f32
    %152 = vector.broadcast %cst_42 : f32 to vector<16x128xf32>
    %153 = arith.addf %152, %151 : vector<16x128xf32>
    %154 = arith.divf %152, %153 : vector<16x128xf32>
    %155 = vector.extract_strided_slice %144 {offsets = [0, 128], sizes = [16, 128], strides = [1, 1]} : vector<16x384xf32> to vector<16x128xf32>
    %156 = vector.extract_strided_slice %146 {offsets = [0, 128], sizes = [16, 128], strides = [1, 1]} : vector<16x384xf32> to vector<16x128xf32>
    %157 = arith.addf %155, %156 : vector<16x128xf32>
    %158 = arith.negf %157 : vector<16x128xf32>
    %159 = math.exp %158 : vector<16x128xf32>
    %cst_43 = arith.constant 1.000000e+00 : f32
    %160 = vector.broadcast %cst_43 : f32 to vector<16x128xf32>
    %161 = arith.addf %160, %159 : vector<16x128xf32>
    %162 = arith.divf %160, %161 : vector<16x128xf32>
    %163 = vector.extract_strided_slice %144 {offsets = [0, 256], sizes = [16, 128], strides = [1, 1]} : vector<16x384xf32> to vector<16x128xf32>
    %164 = vector.extract_strided_slice %146 {offsets = [0, 256], sizes = [16, 128], strides = [1, 1]} : vector<16x384xf32> to vector<16x128xf32>
    %165 = arith.addf %164, %12 : vector<16x128xf32>
    %166 = arith.mulf %154, %165 : vector<16x128xf32>
    %167 = arith.addf %163, %166 : vector<16x128xf32>
    %168 = math.tanh %167 : vector<16x128xf32>
    %cst_44 = arith.constant 1.000000e+00 : f32
    %169 = vector.broadcast %cst_44 : f32 to vector<16x128xf32>
    %170 = arith.subf %169, %162 : vector<16x128xf32>
    %171 = arith.mulf %170, %168 : vector<16x128xf32>
    %172 = arith.mulf %162, %140 : vector<16x128xf32>
    %173 = arith.addf %171, %172 : vector<16x128xf32>
    %174 = vector.broadcast %c3_i32 : i32 to vector<16x1xi32>
    %175 = arith.cmpi sgt, %13, %174 : vector<16x1xi32>
    %cst_45 = arith.constant 0.000000e+00 : f32
    %176 = vector.shape_cast %175 : vector<16x1xi1> to vector<16x1xi1>
    %177 = vector.broadcast %176 : vector<16x1xi1> to vector<16x128xi1>
    %178 = vector.broadcast %cst_45 : f32 to vector<16x128xf32>
    %179 = arith.select %177, %173, %178 : vector<16x128xi1>, vector<16x128xf32>
    %180 = vector.shape_cast %175 : vector<16x1xi1> to vector<16x1xi1>
    %181 = vector.broadcast %180 : vector<16x1xi1> to vector<16x128xi1>
    %182 = arith.select %181, %173, %140 : vector<16x128xi1>, vector<16x128xf32>
    %183 = arith.addf %141, %179 : vector<16x128xf32>
    %c4_i32 = arith.constant 4 : i32
    %184 = arith.index_cast %c4_i32 : i32 to index
    %c0_46 = arith.constant 0 : index
    %c0_47 = arith.constant 0 : index
    %185 = vector.load %arg10[%184, %c0_46, %c0_47] : memref<8x16x384xf32, #tpu.memory_space<vmem>>, vector<1x16x384xf32>
    %186 = vector.shape_cast %185 : vector<1x16x384xf32> to vector<16x384xf32>
    %187 = arith.truncf %182 : vector<16x128xf32> to vector<16x128xbf16>
    %cst_48 = arith.constant dense<0.000000e+00> : vector<16x384xf32>
    %188 = tpu.matmul %187, %9, %cst_48 {dimension_numbers = #tpu.dot_dimension_numbers<[1], [0], [0], [1], [0, 0, 1, 1], [], []>} : vector<16x128xbf16>, vector<128x384xbf16>, vector<16x384xf32> -> vector<16x384xf32>
    %189 = vector.extract_strided_slice %186 {offsets = [0, 0], sizes = [16, 128], strides = [1, 1]} : vector<16x384xf32> to vector<16x128xf32>
    %190 = vector.extract_strided_slice %188 {offsets = [0, 0], sizes = [16, 128], strides = [1, 1]} : vector<16x384xf32> to vector<16x128xf32>
    %191 = arith.addf %189, %190 : vector<16x128xf32>
    %192 = arith.negf %191 : vector<16x128xf32>
    %193 = math.exp %192 : vector<16x128xf32>
    %cst_49 = arith.constant 1.000000e+00 : f32
    %194 = vector.broadcast %cst_49 : f32 to vector<16x128xf32>
    %195 = arith.addf %194, %193 : vector<16x128xf32>
    %196 = arith.divf %194, %195 : vector<16x128xf32>
    %197 = vector.extract_strided_slice %186 {offsets = [0, 128], sizes = [16, 128], strides = [1, 1]} : vector<16x384xf32> to vector<16x128xf32>
    %198 = vector.extract_strided_slice %188 {offsets = [0, 128], sizes = [16, 128], strides = [1, 1]} : vector<16x384xf32> to vector<16x128xf32>
    %199 = arith.addf %197, %198 : vector<16x128xf32>
    %200 = arith.negf %199 : vector<16x128xf32>
    %201 = math.exp %200 : vector<16x128xf32>
    %cst_50 = arith.constant 1.000000e+00 : f32
    %202 = vector.broadcast %cst_50 : f32 to vector<16x128xf32>
    %203 = arith.addf %202, %201 : vector<16x128xf32>
    %204 = arith.divf %202, %203 : vector<16x128xf32>
    %205 = vector.extract_strided_slice %186 {offsets = [0, 256], sizes = [16, 128], strides = [1, 1]} : vector<16x384xf32> to vector<16x128xf32>
    %206 = vector.extract_strided_slice %188 {offsets = [0, 256], sizes = [16, 128], strides = [1, 1]} : vector<16x384xf32> to vector<16x128xf32>
    %207 = arith.addf %206, %12 : vector<16x128xf32>
    %208 = arith.mulf %196, %207 : vector<16x128xf32>
    %209 = arith.addf %205, %208 : vector<16x128xf32>
    %210 = math.tanh %209 : vector<16x128xf32>
    %cst_51 = arith.constant 1.000000e+00 : f32
    %211 = vector.broadcast %cst_51 : f32 to vector<16x128xf32>
    %212 = arith.subf %211, %204 : vector<16x128xf32>
    %213 = arith.mulf %212, %210 : vector<16x128xf32>
    %214 = arith.mulf %204, %182 : vector<16x128xf32>
    %215 = arith.addf %213, %214 : vector<16x128xf32>
    %216 = vector.broadcast %c4_i32 : i32 to vector<16x1xi32>
    %217 = arith.cmpi sgt, %13, %216 : vector<16x1xi32>
    %cst_52 = arith.constant 0.000000e+00 : f32
    %218 = vector.shape_cast %217 : vector<16x1xi1> to vector<16x1xi1>
    %219 = vector.broadcast %218 : vector<16x1xi1> to vector<16x128xi1>
    %220 = vector.broadcast %cst_52 : f32 to vector<16x128xf32>
    %221 = arith.select %219, %215, %220 : vector<16x128xi1>, vector<16x128xf32>
    %222 = vector.shape_cast %217 : vector<16x1xi1> to vector<16x1xi1>
    %223 = vector.broadcast %222 : vector<16x1xi1> to vector<16x128xi1>
    %224 = arith.select %223, %215, %182 : vector<16x128xi1>, vector<16x128xf32>
    %225 = arith.addf %183, %221 : vector<16x128xf32>
    %c5_i32 = arith.constant 5 : i32
    %226 = arith.index_cast %c5_i32 : i32 to index
    %c0_53 = arith.constant 0 : index
    %c0_54 = arith.constant 0 : index
    %227 = vector.load %arg10[%226, %c0_53, %c0_54] : memref<8x16x384xf32, #tpu.memory_space<vmem>>, vector<1x16x384xf32>
    %228 = vector.shape_cast %227 : vector<1x16x384xf32> to vector<16x384xf32>
    %229 = arith.truncf %224 : vector<16x128xf32> to vector<16x128xbf16>
    %cst_55 = arith.constant dense<0.000000e+00> : vector<16x384xf32>
    %230 = tpu.matmul %229, %9, %cst_55 {dimension_numbers = #tpu.dot_dimension_numbers<[1], [0], [0], [1], [0, 0, 1, 1], [], []>} : vector<16x128xbf16>, vector<128x384xbf16>, vector<16x384xf32> -> vector<16x384xf32>
    %231 = vector.extract_strided_slice %228 {offsets = [0, 0], sizes = [16, 128], strides = [1, 1]} : vector<16x384xf32> to vector<16x128xf32>
    %232 = vector.extract_strided_slice %230 {offsets = [0, 0], sizes = [16, 128], strides = [1, 1]} : vector<16x384xf32> to vector<16x128xf32>
    %233 = arith.addf %231, %232 : vector<16x128xf32>
    %234 = arith.negf %233 : vector<16x128xf32>
    %235 = math.exp %234 : vector<16x128xf32>
    %cst_56 = arith.constant 1.000000e+00 : f32
    %236 = vector.broadcast %cst_56 : f32 to vector<16x128xf32>
    %237 = arith.addf %236, %235 : vector<16x128xf32>
    %238 = arith.divf %236, %237 : vector<16x128xf32>
    %239 = vector.extract_strided_slice %228 {offsets = [0, 128], sizes = [16, 128], strides = [1, 1]} : vector<16x384xf32> to vector<16x128xf32>
    %240 = vector.extract_strided_slice %230 {offsets = [0, 128], sizes = [16, 128], strides = [1, 1]} : vector<16x384xf32> to vector<16x128xf32>
    %241 = arith.addf %239, %240 : vector<16x128xf32>
    %242 = arith.negf %241 : vector<16x128xf32>
    %243 = math.exp %242 : vector<16x128xf32>
    %cst_57 = arith.constant 1.000000e+00 : f32
    %244 = vector.broadcast %cst_57 : f32 to vector<16x128xf32>
    %245 = arith.addf %244, %243 : vector<16x128xf32>
    %246 = arith.divf %244, %245 : vector<16x128xf32>
    %247 = vector.extract_strided_slice %228 {offsets = [0, 256], sizes = [16, 128], strides = [1, 1]} : vector<16x384xf32> to vector<16x128xf32>
    %248 = vector.extract_strided_slice %230 {offsets = [0, 256], sizes = [16, 128], strides = [1, 1]} : vector<16x384xf32> to vector<16x128xf32>
    %249 = arith.addf %248, %12 : vector<16x128xf32>
    %250 = arith.mulf %238, %249 : vector<16x128xf32>
    %251 = arith.addf %247, %250 : vector<16x128xf32>
    %252 = math.tanh %251 : vector<16x128xf32>
    %cst_58 = arith.constant 1.000000e+00 : f32
    %253 = vector.broadcast %cst_58 : f32 to vector<16x128xf32>
    %254 = arith.subf %253, %246 : vector<16x128xf32>
    %255 = arith.mulf %254, %252 : vector<16x128xf32>
    %256 = arith.mulf %246, %224 : vector<16x128xf32>
    %257 = arith.addf %255, %256 : vector<16x128xf32>
    %258 = vector.broadcast %c5_i32 : i32 to vector<16x1xi32>
    %259 = arith.cmpi sgt, %13, %258 : vector<16x1xi32>
    %cst_59 = arith.constant 0.000000e+00 : f32
    %260 = vector.shape_cast %259 : vector<16x1xi1> to vector<16x1xi1>
    %261 = vector.broadcast %260 : vector<16x1xi1> to vector<16x128xi1>
    %262 = vector.broadcast %cst_59 : f32 to vector<16x128xf32>
    %263 = arith.select %261, %257, %262 : vector<16x128xi1>, vector<16x128xf32>
    %264 = vector.shape_cast %259 : vector<16x1xi1> to vector<16x1xi1>
    %265 = vector.broadcast %264 : vector<16x1xi1> to vector<16x128xi1>
    %266 = arith.select %265, %257, %224 : vector<16x128xi1>, vector<16x128xf32>
    %267 = arith.addf %225, %263 : vector<16x128xf32>
    %c6_i32 = arith.constant 6 : i32
    %268 = arith.index_cast %c6_i32 : i32 to index
    %c0_60 = arith.constant 0 : index
    %c0_61 = arith.constant 0 : index
    %269 = vector.load %arg10[%268, %c0_60, %c0_61] : memref<8x16x384xf32, #tpu.memory_space<vmem>>, vector<1x16x384xf32>
    %270 = vector.shape_cast %269 : vector<1x16x384xf32> to vector<16x384xf32>
    %271 = arith.truncf %266 : vector<16x128xf32> to vector<16x128xbf16>
    %cst_62 = arith.constant dense<0.000000e+00> : vector<16x384xf32>
    %272 = tpu.matmul %271, %9, %cst_62 {dimension_numbers = #tpu.dot_dimension_numbers<[1], [0], [0], [1], [0, 0, 1, 1], [], []>} : vector<16x128xbf16>, vector<128x384xbf16>, vector<16x384xf32> -> vector<16x384xf32>
    %273 = vector.extract_strided_slice %270 {offsets = [0, 0], sizes = [16, 128], strides = [1, 1]} : vector<16x384xf32> to vector<16x128xf32>
    %274 = vector.extract_strided_slice %272 {offsets = [0, 0], sizes = [16, 128], strides = [1, 1]} : vector<16x384xf32> to vector<16x128xf32>
    %275 = arith.addf %273, %274 : vector<16x128xf32>
    %276 = arith.negf %275 : vector<16x128xf32>
    %277 = math.exp %276 : vector<16x128xf32>
    %cst_63 = arith.constant 1.000000e+00 : f32
    %278 = vector.broadcast %cst_63 : f32 to vector<16x128xf32>
    %279 = arith.addf %278, %277 : vector<16x128xf32>
    %280 = arith.divf %278, %279 : vector<16x128xf32>
    %281 = vector.extract_strided_slice %270 {offsets = [0, 128], sizes = [16, 128], strides = [1, 1]} : vector<16x384xf32> to vector<16x128xf32>
    %282 = vector.extract_strided_slice %272 {offsets = [0, 128], sizes = [16, 128], strides = [1, 1]} : vector<16x384xf32> to vector<16x128xf32>
    %283 = arith.addf %281, %282 : vector<16x128xf32>
    %284 = arith.negf %283 : vector<16x128xf32>
    %285 = math.exp %284 : vector<16x128xf32>
    %cst_64 = arith.constant 1.000000e+00 : f32
    %286 = vector.broadcast %cst_64 : f32 to vector<16x128xf32>
    %287 = arith.addf %286, %285 : vector<16x128xf32>
    %288 = arith.divf %286, %287 : vector<16x128xf32>
    %289 = vector.extract_strided_slice %270 {offsets = [0, 256], sizes = [16, 128], strides = [1, 1]} : vector<16x384xf32> to vector<16x128xf32>
    %290 = vector.extract_strided_slice %272 {offsets = [0, 256], sizes = [16, 128], strides = [1, 1]} : vector<16x384xf32> to vector<16x128xf32>
    %291 = arith.addf %290, %12 : vector<16x128xf32>
    %292 = arith.mulf %280, %291 : vector<16x128xf32>
    %293 = arith.addf %289, %292 : vector<16x128xf32>
    %294 = math.tanh %293 : vector<16x128xf32>
    %cst_65 = arith.constant 1.000000e+00 : f32
    %295 = vector.broadcast %cst_65 : f32 to vector<16x128xf32>
    %296 = arith.subf %295, %288 : vector<16x128xf32>
    %297 = arith.mulf %296, %294 : vector<16x128xf32>
    %298 = arith.mulf %288, %266 : vector<16x128xf32>
    %299 = arith.addf %297, %298 : vector<16x128xf32>
    %300 = vector.broadcast %c6_i32 : i32 to vector<16x1xi32>
    %301 = arith.cmpi sgt, %13, %300 : vector<16x1xi32>
    %cst_66 = arith.constant 0.000000e+00 : f32
    %302 = vector.shape_cast %301 : vector<16x1xi1> to vector<16x1xi1>
    %303 = vector.broadcast %302 : vector<16x1xi1> to vector<16x128xi1>
    %304 = vector.broadcast %cst_66 : f32 to vector<16x128xf32>
    %305 = arith.select %303, %299, %304 : vector<16x128xi1>, vector<16x128xf32>
    %306 = vector.shape_cast %301 : vector<16x1xi1> to vector<16x1xi1>
    %307 = vector.broadcast %306 : vector<16x1xi1> to vector<16x128xi1>
    %308 = arith.select %307, %299, %266 : vector<16x128xi1>, vector<16x128xf32>
    %309 = arith.addf %267, %305 : vector<16x128xf32>
    %c7_i32 = arith.constant 7 : i32
    %310 = arith.index_cast %c7_i32 : i32 to index
    %c0_67 = arith.constant 0 : index
    %c0_68 = arith.constant 0 : index
    %311 = vector.load %arg10[%310, %c0_67, %c0_68] : memref<8x16x384xf32, #tpu.memory_space<vmem>>, vector<1x16x384xf32>
    %312 = vector.shape_cast %311 : vector<1x16x384xf32> to vector<16x384xf32>
    %313 = arith.truncf %308 : vector<16x128xf32> to vector<16x128xbf16>
    %cst_69 = arith.constant dense<0.000000e+00> : vector<16x384xf32>
    %314 = tpu.matmul %313, %9, %cst_69 {dimension_numbers = #tpu.dot_dimension_numbers<[1], [0], [0], [1], [0, 0, 1, 1], [], []>} : vector<16x128xbf16>, vector<128x384xbf16>, vector<16x384xf32> -> vector<16x384xf32>
    %315 = vector.extract_strided_slice %312 {offsets = [0, 0], sizes = [16, 128], strides = [1, 1]} : vector<16x384xf32> to vector<16x128xf32>
    %316 = vector.extract_strided_slice %314 {offsets = [0, 0], sizes = [16, 128], strides = [1, 1]} : vector<16x384xf32> to vector<16x128xf32>
    %317 = arith.addf %315, %316 : vector<16x128xf32>
    %318 = arith.negf %317 : vector<16x128xf32>
    %319 = math.exp %318 : vector<16x128xf32>
    %cst_70 = arith.constant 1.000000e+00 : f32
    %320 = vector.broadcast %cst_70 : f32 to vector<16x128xf32>
    %321 = arith.addf %320, %319 : vector<16x128xf32>
    %322 = arith.divf %320, %321 : vector<16x128xf32>
    %323 = vector.extract_strided_slice %312 {offsets = [0, 128], sizes = [16, 128], strides = [1, 1]} : vector<16x384xf32> to vector<16x128xf32>
    %324 = vector.extract_strided_slice %314 {offsets = [0, 128], sizes = [16, 128], strides = [1, 1]} : vector<16x384xf32> to vector<16x128xf32>
    %325 = arith.addf %323, %324 : vector<16x128xf32>
    %326 = arith.negf %325 : vector<16x128xf32>
    %327 = math.exp %326 : vector<16x128xf32>
    %cst_71 = arith.constant 1.000000e+00 : f32
    %328 = vector.broadcast %cst_71 : f32 to vector<16x128xf32>
    %329 = arith.addf %328, %327 : vector<16x128xf32>
    %330 = arith.divf %328, %329 : vector<16x128xf32>
    %331 = vector.extract_strided_slice %312 {offsets = [0, 256], sizes = [16, 128], strides = [1, 1]} : vector<16x384xf32> to vector<16x128xf32>
    %332 = vector.extract_strided_slice %314 {offsets = [0, 256], sizes = [16, 128], strides = [1, 1]} : vector<16x384xf32> to vector<16x128xf32>
    %333 = arith.addf %332, %12 : vector<16x128xf32>
    %334 = arith.mulf %322, %333 : vector<16x128xf32>
    %335 = arith.addf %331, %334 : vector<16x128xf32>
    %336 = math.tanh %335 : vector<16x128xf32>
    %cst_72 = arith.constant 1.000000e+00 : f32
    %337 = vector.broadcast %cst_72 : f32 to vector<16x128xf32>
    %338 = arith.subf %337, %330 : vector<16x128xf32>
    %339 = arith.mulf %338, %336 : vector<16x128xf32>
    %340 = arith.mulf %330, %308 : vector<16x128xf32>
    %341 = arith.addf %339, %340 : vector<16x128xf32>
    %342 = vector.broadcast %c7_i32 : i32 to vector<16x1xi32>
    %343 = arith.cmpi sgt, %13, %342 : vector<16x1xi32>
    %cst_73 = arith.constant 0.000000e+00 : f32
    %344 = vector.shape_cast %343 : vector<16x1xi1> to vector<16x1xi1>
    %345 = vector.broadcast %344 : vector<16x1xi1> to vector<16x128xi1>
    %346 = vector.broadcast %cst_73 : f32 to vector<16x128xf32>
    %347 = arith.select %345, %341, %346 : vector<16x128xi1>, vector<16x128xf32>
    %348 = vector.shape_cast %343 : vector<16x1xi1> to vector<16x1xi1>
    %349 = vector.broadcast %348 : vector<16x1xi1> to vector<16x128xi1>
    %350 = arith.select %349, %341, %308 : vector<16x128xi1>, vector<16x128xf32>
    %351 = arith.addf %309, %347 : vector<16x128xf32>
    %c8_i32 = arith.constant 8 : i32
    %352 = arith.sitofp %13 : vector<16x1xi32> to vector<16x1xf32>
    %cst_74 = arith.constant 1.000000e+00 : f32
    %353 = vector.broadcast %cst_74 : f32 to vector<16x1xf32>
    %354 = arith.maximumf %352, %353 : vector<16x1xf32>
    %355 = vector.broadcast %354 : vector<16x1xf32> to vector<16x128xf32>
    %356 = arith.divf %351, %355 : vector<16x128xf32>
    %c0_75 = arith.constant 0 : index
    %c0_76 = arith.constant 0 : index
    %357 = vector.load %arg9[%c0_75, %c0_76] : memref<16x128xf32, #tpu.memory_space<vmem>>, vector<16x128xf32>
    tpu.vector_store %arg9[%c0_75, %c0_76], %356 {strides = array<i32>} : memref<16x128xf32, #tpu.memory_space<vmem>>, vector<16x128xf32>,
    %c0_77 = arith.constant 0 : index
    %c0_78 = arith.constant 0 : index
    %358 = vector.load %arg8[%c0_77, %c0_78] : memref<16x128xf32, #tpu.memory_space<vmem>>, vector<16x128xf32>
    tpu.vector_store %arg8[%c0_77, %c0_78], %350 {strides = array<i32>} : memref<16x128xf32, #tpu.memory_space<vmem>>, vector<16x128xf32>,
    return
  }
  func.func @transform_0(%arg0: i32) -> (i32, i32, i32) {
    %c0_i32 = arith.constant 0 : i32
    %c0_i32_0 = arith.constant 0 : i32
    %c0_i32_1 = arith.constant 0 : i32
    return %c0_i32, %arg0, %c0_i32_0 : i32, i32, i32
  }
  func.func @transform_1(%arg0: i32) -> (i32, i32) {
    %c0_i32 = arith.constant 0 : i32
    %c0_i32_0 = arith.constant 0 : i32
    return %arg0, %c0_i32 : i32, i32
  }
  func.func @transform_2(%arg0: i32) -> (i32, i32) {
    %c0_i32 = arith.constant 0 : i32
    %c0_i32_0 = arith.constant 0 : i32
    return %arg0, %c0_i32 : i32, i32
  }
  func.func @transform_3(%arg0: i32) -> (i32, i32) {
    %c0_i32 = arith.constant 0 : i32
    %c0_i32_0 = arith.constant 0 : i32
    %c0_i32_1 = arith.constant 0 : i32
    return %c0_i32, %c0_i32_0 : i32, i32
  }
  func.func @transform_4(%arg0: i32) -> (i32, i32) {
    %c0_i32 = arith.constant 0 : i32
    %c0_i32_0 = arith.constant 0 : i32
    %c0_i32_1 = arith.constant 0 : i32
    return %c0_i32, %c0_i32_0 : i32, i32
  }
  func.func @transform_5(%arg0: i32) -> (i32, i32) {
    %c0_i32 = arith.constant 0 : i32
    %c0_i32_0 = arith.constant 0 : i32
    %c0_i32_1 = arith.constant 0 : i32
    return %c0_i32, %c0_i32_0 : i32, i32
  }
  func.func @transform_6(%arg0: i32) -> (i32, i32) {
    %c0_i32 = arith.constant 0 : i32
    %c0_i32_0 = arith.constant 0 : i32
    %c0_i32_1 = arith.constant 0 : i32
    return %c0_i32, %c0_i32_0 : i32, i32
  }
  func.func @transform_7(%arg0: i32) -> (i32, i32) {
    %c0_i32 = arith.constant 0 : i32
    %c0_i32_0 = arith.constant 0 : i32
    return %arg0, %c0_i32 : i32, i32
  }
  func.func @transform_8(%arg0: i32) -> (i32, i32) {
    %c0_i32 = arith.constant 0 : i32
    %c0_i32_0 = arith.constant 0 : i32
    return %arg0, %c0_i32 : i32, i32
  }
}

</mosaic_0001>

<llo_original>
// kernel: tpu_custom_call.1
$region0: #{tpu_custom_call.1}
  #allocation0 [shape = 'u32[]', space=smem, size = 0x4, offset = 0x4, fixed_abs, tag = 'smem constant byte address 0x4 - core index']
  #allocation1 [shape = 'u32[144,128]{1,0:T(1,128)}', space=vmem, size = 0x12000, scoped, tag = 'internal scratch']
  #allocation2 [shape = 'f32[8,16,384]{2,1,0:T(8,128)}', space=vmem, size = 0x30000, scoped, tag = 'scratch operand']
  %s0 = inlined_call_operand.hbm [shape: bf16[8,16,128], index: 0, kind: input, shape index: {}]
  %s1 = inlined_call_operand.vmem [shape: s32[16,1], index: 1, kind: input, shape index: {}]
  %s2 = inlined_call_operand.vmem [shape: f32[16,128], index: 2, kind: input, shape index: {}]
  %s3 = inlined_call_operand.hbm [shape: bf16[128,384], index: 3, kind: input, shape index: {}]
  %s4 = inlined_call_operand.hbm [shape: bf16[128,384], index: 4, kind: input, shape index: {}]
  %s5 = inlined_call_operand.vmem [shape: f32[1,384], index: 5, kind: input, shape index: {}]
  %s6 = inlined_call_operand.vmem [shape: f32[1,128], index: 6, kind: input, shape index: {}]
  %s7 = inlined_call_operand.hbm [shape: f32[16,128], index: 7, kind: output, shape index: {0}]
  %s8 = inlined_call_operand.hbm [shape: f32[16,128], index: 8, kind: output, shape index: {1}]
  %9 = xla_tuple %s7, %s8
  %s10 = sld [smem:[#allocation0]]
  $region58: #{tpu_custom_call.1} parent=0
    _
  %s12 = ssub.s32 1, %s10
  %s13 = scalar_select 0, %s12, %s10
  $region1: #{tpu_custom_call.1} parent=0
    #allocation3 [shape = 'u8[32768]{0}', space=vmem, size = 0x8000, scoped, tag = 'input window, operand 0, single buffered']
    #allocation4 [shape = 's32[1]{0}', space=sflag, size = 0x4, scoped, tag = 'scoped memory for tpu_custom_call.1']
    #allocation5 [shape = 's32[1]{0}', space=sflag, size = 0x4, scoped, tag = 'scoped memory for tpu_custom_call.1']
    #allocation6 [shape = 'u8[98304]{0}', space=vmem, size = 0x18000, scoped, tag = 'input window, operand 3, single buffered']
    #allocation7 [shape = 's32[1]{0}', space=sflag, size = 0x4, scoped, tag = 'scoped memory for tpu_custom_call.1']
    #allocation8 [shape = 'u8[98304]{0}', space=vmem, size = 0x18000, scoped, tag = 'input window, operand 4, single buffered']
    #allocation9 [shape = 'u8[8192]{0}', space=vmem, size = 0x2000, scoped, tag = 'output window, operand 0, single buffered']
    #allocation10 [shape = 'u8[8192]{0}', space=vmem, size = 0x2000, scoped, tag = 'output window, operand 1, single buffered']
    #allocation11 [shape = 's32[1]{0}', space=sflag, size = 0x4, scoped, tag = 'scoped memory for tpu_custom_call.1']
    %14 = vsyncpa [#allocation4], 0
    %15 = vsyncpa [#allocation7], 0
    %16 = vsyncpa [#allocation5], 0
    %17 = vsyncpa [#allocation11], 0
    // Predicated region
    $region2: #{tpu_custom_call.1} parent=1 // pred_check
      _
    $region3: #{tpu_custom_call.1} parent=1 // pred_check_branch
      %19 = sbr.rel (0) target = $region5
    $region4: #{tpu_custom_call.1} parent=1 // pred_region
      %s21 = ssub.s32 1024, 1024
      %22 = vsyncadd [#allocation4], %s21
      %s23 = sshll.u32 [#allocation3], 4
      %s24 = int_to_ptr.vmem [resolvable:$true] %s23
      %29 = dma.hbm_to_vmem [thread:$0]  %s0, 1024, %s24, [#allocation4], 64, 64, 4
    $region5: #{tpu_custom_call.1} parent=1 // pred_fallthru
      _
    // Predicated region
    $region6: #{tpu_custom_call.1} parent=1 // pred_check
      _
    $region7: #{tpu_custom_call.1} parent=1 // pred_check_branch
      %31 = sbr.rel (0) target = $region9
    $region8: #{tpu_custom_call.1} parent=1 // pred_region
      _
    $region9: #{tpu_custom_call.1} parent=1 // pred_fallthru
      _
    // Predicated region
    $region10: #{tpu_custom_call.1} parent=1 // pred_check
      _
    $region11: #{tpu_custom_call.1} parent=1 // pred_check_branch
      %33 = sbr.rel (0) target = $region13
    $region12: #{tpu_custom_call.1} parent=1 // pred_region
      _
    $region13: #{tpu_custom_call.1} parent=1 // pred_fallthru
      _
    // Predicated region
    $region14: #{tpu_custom_call.1} parent=1 // pred_check
      _
    $region15: #{tpu_custom_call.1} parent=1 // pred_check_branch
      %35 = sbr.rel (0) target = $region17
    $region16: #{tpu_custom_call.1} parent=1 // pred_region
      %s37 = ssub.s32 3072, 3072
      %38 = vsyncadd [#allocation7], %s37
      %s39 = sshll.u32 [#allocation6], 4
      %s40 = int_to_ptr.vmem [resolvable:$true] %s39
      %45 = dma.hbm_to_vmem [thread:$0]  %s3, 3072, %s40, [#allocation7], 192, 192, 12
    $region17: #{tpu_custom_call.1} parent=1 // pred_fallthru
      _
    // Predicated region
    $region18: #{tpu_custom_call.1} parent=1 // pred_check
      _
    $region19: #{tpu_custom_call.1} parent=1 // pred_check_branch
      %47 = sbr.rel (0) target = $region21
    $region20: #{tpu_custom_call.1} parent=1 // pred_region
      %s49 = ssub.s32 3072, 3072
      %50 = vsyncadd [#allocation7], %s49
      %s51 = sshll.u32 [#allocation8], 4
      %s52 = int_to_ptr.vmem [resolvable:$true] %s51
      %57 = dma.hbm_to_vmem [thread:$0]  %s4, 3072, %s52, [#allocation7], 192, 192, 12
    $region21: #{tpu_custom_call.1} parent=1 // pred_fallthru
      _
    // Predicated region
    $region22: #{tpu_custom_call.1} parent=1 // pred_check
      _
    $region23: #{tpu_custom_call.1} parent=1 // pred_check_branch
      %59 = sbr.rel (0) target = $region25
    $region24: #{tpu_custom_call.1} parent=1 // pred_region
      _
    $region25: #{tpu_custom_call.1} parent=1 // pred_fallthru
      _
    // Predicated region
    $region26: #{tpu_custom_call.1} parent=1 // pred_check
      _
    $region27: #{tpu_custom_call.1} parent=1 // pred_check_branch
      %61 = sbr.rel (0) target = $region29
    $region28: #{tpu_custom_call.1} parent=1 // pred_region
      _
    $region29: #{tpu_custom_call.1} parent=1 // pred_fallthru
      _
    // Predicated region
    $region30: #{tpu_custom_call.1} parent=1 // pred_check
      _
    $region31: #{tpu_custom_call.1} parent=1 // pred_check_branch
      %63 = sbr.rel (0) target = $region33
    $region32: #{tpu_custom_call.1} parent=1 // pred_region
      %64 = dma.done [#allocation4], 1024
    $region33: #{tpu_custom_call.1} parent=1 // pred_fallthru
      _
    // Predicated region
    $region34: #{tpu_custom_call.1} parent=1 // pred_check
      _
    $region35: #{tpu_custom_call.1} parent=1 // pred_check_branch
      %66 = sbr.rel (0) target = $region37
    $region36: #{tpu_custom_call.1} parent=1 // pred_region
      %67 = dma.done [#allocation7], 3072
    $region37: #{tpu_custom_call.1} parent=1 // pred_fallthru
      _
    // Predicated region
    $region38: #{tpu_custom_call.1} parent=1 // pred_check
      _
    $region39: #{tpu_custom_call.1} parent=1 // pred_check_branch
      %69 = sbr.rel (0) target = $region41
    $region40: #{tpu_custom_call.1} parent=1 // pred_region
      %70 = dma.done [#allocation7], 3072
    $region41: #{tpu_custom_call.1} parent=1 // pred_fallthru
      _
    %v72 = vld [vmem:[#allocation3] sm:$0xf]
    %v73 = vld [vmem:[#allocation3 + $0x4] sm:$0xf]
    %v74 = vld [vmem:[#allocation3 + $0x8] sm:$0xf]
    %v75 = vld [vmem:[#allocation3 + $0xc] sm:$0xf]
    %v76 = vld [vmem:[#allocation3 + $0x10] sm:$0xf]
    %v77 = vld [vmem:[#allocation3 + $0x14] sm:$0xf]
    %v78 = vld [vmem:[#allocation3 + $0x18] sm:$0xf]
    %v79 = vld [vmem:[#allocation3 + $0x1c] sm:$0xf]
    %v80 = vld [vmem:[#allocation3 + $0x20] sm:$0xf]
    %v81 = vld [vmem:[#allocation3 + $0x24] sm:$0xf]
    %v82 = vld [vmem:[#allocation3 + $0x28] sm:$0xf]
    %v83 = vld [vmem:[#allocation3 + $0x2c] sm:$0xf]
    %v84 = vld [vmem:[#allocation3 + $0x30] sm:$0xf]
    %v85 = vld [vmem:[#allocation3 + $0x34] sm:$0xf]
    %v86 = vld [vmem:[#allocation3 + $0x38] sm:$0xf]
    %v87 = vld [vmem:[#allocation3 + $0x3c] sm:$0xf]
    %v88 = vld [vmem:[#allocation6] sm:$0xff]
    %v89 = vld [vmem:[#allocation6 + $0x8] sm:$0xf]
    %v90 = vld [vmem:[#allocation6 + $0xc] sm:$0xff]
    %v91 = vld [vmem:[#allocation6 + $0x14] sm:$0xf]
    %v92 = vld [vmem:[#allocation6 + $0x18] sm:$0xff]
    %v93 = vld [vmem:[#allocation6 + $0x20] sm:$0xf]
    %v94 = vld [vmem:[#allocation6 + $0x24] sm:$0xff]
    %v95 = vld [vmem:[#allocation6 + $0x2c] sm:$0xf]
    %v96 = vld [vmem:[#allocation6 + $0x30] sm:$0xff]
    %v97 = vld [vmem:[#allocation6 + $0x38] sm:$0xf]
    %v98 = vld [vmem:[#allocation6 + $0x3c] sm:$0xff]
    %v99 = vld [vmem:[#allocation6 + $0x44] sm:$0xf]
    %v100 = vld [vmem:[#allocation6 + $0x48] sm:$0xff]
    %v101 = vld [vmem:[#allocation6 + $0x50] sm:$0xf]
    %v102 = vld [vmem:[#allocation6 + $0x54] sm:$0xff]
    %v103 = vld [vmem:[#allocation6 + $0x5c] sm:$0xf]
    %v104 = vld [vmem:[#allocation6 + $0x60] sm:$0xff]
    %v105 = vld [vmem:[#allocation6 + $0x68] sm:$0xf]
    %v106 = vld [vmem:[#allocation6 + $0x6c] sm:$0xff]
    %v107 = vld [vmem:[#allocation6 + $0x74] sm:$0xf]
    %v108 = vld [vmem:[#allocation6 + $0x78] sm:$0xff]
    %v109 = vld [vmem:[#allocation6 + $0x80] sm:$0xf]
    %v110 = vld [vmem:[#allocation6 + $0x84] sm:$0xff]
    %v111 = vld [vmem:[#allocation6 + $0x8c] sm:$0xf]
    %v112 = vld [vmem:[#allocation6 + $0x90] sm:$0xff]
    %v113 = vld [vmem:[#allocation6 + $0x98] sm:$0xf]
    %v114 = vld [vmem:[#allocation6 + $0x9c] sm:$0xff]
    %v115 = vld [vmem:[#allocation6 + $0xa4] sm:$0xf]
    %v116 = vld [vmem:[#allocation6 + $0xa8] sm:$0xff]
    %v117 = vld [vmem:[#allocation6 + $0xb0] sm:$0xf]
    %v118 = vld [vmem:[#allocation6 + $0xb4] sm:$0xff]
    %v119 = vld [vmem:[#allocation6 + $0xbc] sm:$0xf]
    %v120 = vld [vmem:[%s5] sm:$0x7]
    %v122 = vlaneseq
    %v123 = vshrl.u32 %v122, 7
    %v124 = vsub.s32 0, %v123
    %v125 = vrot.slane %v120, %v124
    %v126 = vlaneseq
    %v127 = vshrl.u32 %v126, 7
    %v128 = vsub.s32 1, %v127
    %v129 = vrot.slane %v120, %v128
    %v130 = vlaneseq
    %v131 = vshrl.u32 %v130, 7
    %v132 = vsub.s32 2, %v131
    %v133 = vrot.slane %v120, %v132
    %v153 = vunpack.c.l.b16 %v72
    %v154 = vunpack.c.l.b16 %v73
    %v155 = vunpack.c.l.b16 %v74
    %v156 = vunpack.c.l.b16 %v75
    %v157 = vunpack.c.l.b16 %v76
    %v158 = vunpack.c.l.b16 %v77
    %v159 = vunpack.c.l.b16 %v78
    %v160 = vunpack.c.l.b16 %v79
    %v161 = vunpack.c.l.b16 %v80
    %v162 = vunpack.c.l.b16 %v81
    %v163 = vunpack.c.l.b16 %v82
    %v164 = vunpack.c.l.b16 %v83
    %v165 = vunpack.c.l.b16 %v84
    %v166 = vunpack.c.l.b16 %v85
    %v167 = vunpack.c.l.b16 %v86
    %v168 = vunpack.c.l.b16 %v87
    %v169 = vpack.c.b16 %v154, %v153
    %v170 = vpack.c.b16 %v156, %v155
    %v171 = vpack.c.b16 %v158, %v157
    %v172 = vpack.c.b16 %v160, %v159
    %v173 = vpack.c.b16 %v162, %v161
    %v174 = vpack.c.b16 %v164, %v163
    %v175 = vpack.c.b16 %v166, %v165
    %v176 = vpack.c.b16 %v168, %v167
    %v217 = vunpack.c.l.b16 %v88
    %v218 = vunpack.c.h.b16 %v88
    %v219 = vunpack.c.l.b16 %v89
    %v220 = vunpack.c.l.b16 %v90
    %v221 = vunpack.c.h.b16 %v90
    %v222 = vunpack.c.l.b16 %v91
    %v223 = vunpack.c.l.b16 %v92
    %v224 = vunpack.c.h.b16 %v92
    %v225 = vunpack.c.l.b16 %v93
    %v226 = vunpack.c.l.b16 %v94
    %v227 = vunpack.c.h.b16 %v94
    %v228 = vunpack.c.l.b16 %v95
    %v229 = vunpack.c.l.b16 %v96
    %v230 = vunpack.c.h.b16 %v96
    %v231 = vunpack.c.l.b16 %v97
    %v232 = vunpack.c.l.b16 %v98
    %v233 = vunpack.c.h.b16 %v98
    %v234 = vunpack.c.l.b16 %v99
    %v235 = vunpack.c.l.b16 %v100
    %v236 = vunpack.c.h.b16 %v100
    %v237 = vunpack.c.l.b16 %v101
    %v238 = vunpack.c.l.b16 %v102
    %v239 = vunpack.c.h.b16 %v102
    %v240 = vunpack.c.l.b16 %v103
    %v241 = vunpack.c.l.b16 %v104
    %v242 = vunpack.c.h.b16 %v104
    %v243 = vunpack.c.l.b16 %v105
    %v244 = vunpack.c.l.b16 %v106
    %v245 = vunpack.c.h.b16 %v106
    %v246 = vunpack.c.l.b16 %v107
    %v247 = vunpack.c.l.b16 %v108
    %v248 = vunpack.c.h.b16 %v108
    %v249 = vunpack.c.l.b16 %v109
    %v250 = vunpack.c.l.b16 %v110
    %v251 = vunpack.c.h.b16 %v110
    %v252 = vunpack.c.l.b16 %v111
    %v253 = vunpack.c.l.b16 %v112
    %v254 = vunpack.c.h.b16 %v112
    %v255 = vunpack.c.l.b16 %v113
    %v256 = vunpack.c.l.b16 %v114
    %v257 = vunpack.c.h.b16 %v114
    %v258 = vunpack.c.l.b16 %v115
    %v259 = vunpack.c.l.b16 %v116
    %v260 = vunpack.c.h.b16 %v116
    %v261 = vunpack.c.l.b16 %v117
    %v262 = vunpack.c.l.b16 %v118
    %v263 = vunpack.c.h.b16 %v118
    %v264 = vunpack.c.l.b16 %v119
    %v265 = vpack.c.b16 %v220, %v217
    %v266 = vpack.c.b16 %v221, %v218
    %v267 = vpack.c.b16 %v222, %v219
    %v268 = vpack.c.b16 %v226, %v223
    %v269 = vpack.c.b16 %v227, %v224
    %v270 = vpack.c.b16 %v228, %v225
    %v271 = vpack.c.b16 %v232, %v229
    %v272 = vpack.c.b16 %v233, %v230
    %v273 = vpack.c.b16 %v234, %v231
    %v274 = vpack.c.b16 %v238, %v235
    %v275 = vpack.c.b16 %v239, %v236
    %v276 = vpack.c.b16 %v240, %v237
    %v277 = vpack.c.b16 %v244, %v241
    %v278 = vpack.c.b16 %v245, %v242
    %v279 = vpack.c.b16 %v246, %v243
    %v280 = vpack.c.b16 %v250, %v247
    %v281 = vpack.c.b16 %v251, %v248
    %v282 = vpack.c.b16 %v252, %v249
    %v283 = vpack.c.b16 %v256, %v253
    %v284 = vpack.c.b16 %v257, %v254
    %v285 = vpack.c.b16 %v258, %v255
    %v286 = vpack.c.b16 %v262, %v259
    %v287 = vpack.c.b16 %v263, %v260
    %v288 = vpack.c.b16 %v264, %v261
    %313 = vmatprep.subr.bf16.mxu0 %v266
    %314 = vmatpush1.bf16.msra.mxu0 %v265
    %315 = vmatprep.subr.bf16.mxu0 %v269
    %316 = vmatpush1.bf16.msra.mxu0 %v268
    %317 = vmatprep.subr.bf16.mxu0 %v272
    %318 = vmatpush1.bf16.msra.mxu0 %v271
    %319 = vmatprep.subr.bf16.mxu0 %v275
    %320 = vmatpush1.bf16.msra.mxu0 %v274
    %321 = vmatprep.subr.bf16.mxu0 %v278
    %322 = vmatpush1.bf16.msra.mxu0 %v277
    %323 = vmatprep.subr.bf16.mxu0 %v281
    %324 = vmatpush1.bf16.msra.mxu0 %v280
    %325 = vmatprep.subr.bf16.mxu0 %v284
    %326 = vmatpush1.bf16.msra.mxu0 %v283
    %327 = vmatprep.subr.bf16.mxu0 %v287
    %328 = vmatpush1.bf16.msra.mxu0 %v286
    %329 = vmatprep.subr.bf16.mxu0 0
    %330 = vmatpush1.bf16.msra.mxu0 0
    %331 = vmatprep.subr.bf16.mxu0 0
    %332 = vmatpush1.bf16.msra.mxu0 0
    %333 = vmatprep.subr.bf16.mxu0 0
    %334 = vmatpush1.bf16.msra.mxu0 0
    %335 = vmatprep.subr.bf16.mxu0 0
    %336 = vmatpush1.bf16.msra.mxu0 0
    %337 = vmatprep.subr.bf16.mxu0 0
    %338 = vmatpush1.bf16.msra.mxu0 0
    %339 = vmatprep.subr.bf16.mxu0 0
    %340 = vmatpush1.bf16.msra.mxu0 0
    %341 = vmatprep.subr.bf16.mxu0 0
    %342 = vmatpush1.bf16.msra.mxu0 0
    %343 = vmatprep.subr.bf16.mxu0 0
    %344 = vmatpush1.bf16.msra.mxu0 0
    %345 = vmatprep.mubr.bf16.mxu0 0
    %346 = vmatmul.mubr.bf16.gmra.mrb[0].mxu0 %v169
    %v347 = vpop.f32.mrb[0].mxu0
    %v348 = vadd.f32 %v125, %v347
    %v349 = vpop.f32.mrb[0].mxu0
    %v350 = vadd.f32 %v129, %v349
    %v351 = vpop.f32.mrb[0].mxu0
    %v352 = vadd.f32 %v125, %v351
    %v353 = vpop.f32.mrb[0].mxu0
    %v354 = vadd.f32 %v129, %v353
    %355 = vmatprep.mubr.bf16.mxu0 0
    %356 = vmatmul.mubr.bf16.gmra.mrb[0].mxu0 %v170
    %v357 = vpop.f32.mrb[0].mxu0
    %v358 = vadd.f32 %v125, %v357
    %v359 = vpop.f32.mrb[0].mxu0
    %v360 = vadd.f32 %v129, %v359
    %v361 = vpop.f32.mrb[0].mxu0
    %v362 = vadd.f32 %v125, %v361
    %v363 = vpop.f32.mrb[0].mxu0
    %v364 = vadd.f32 %v129, %v363
    %365 = vmatprep.mubr.bf16.mxu0 0
    %366 = vmatmul.mubr.bf16.gmra.mrb[0].mxu0 %v171
    %v367 = vpop.f32.mrb[0].mxu0
    %v368 = vadd.f32 %v125, %v367
    %v369 = vpop.f32.mrb[0].mxu0
    %v370 = vadd.f32 %v129, %v369
    %v371 = vpop.f32.mrb[0].mxu0
    %v372 = vadd.f32 %v125, %v371
    %v373 = vpop.f32.mrb[0].mxu0
    %v374 = vadd.f32 %v129, %v373
    %375 = vmatprep.mubr.bf16.mxu0 0
    %376 = vmatmul.mubr.bf16.gmra.mrb[0].mxu0 %v172
    %v377 = vpop.f32.mrb[0].mxu0
    %v378 = vadd.f32 %v125, %v377
    %v379 = vpop.f32.mrb[0].mxu0
    %v380 = vadd.f32 %v129, %v379
    %v381 = vpop.f32.mrb[0].mxu0
    %v382 = vadd.f32 %v125, %v381
    %v383 = vpop.f32.mrb[0].mxu0
    %v384 = vadd.f32 %v129, %v383
    %385 = vmatprep.mubr.bf16.mxu0 0
    %386 = vmatmul.mubr.bf16.gmra.mrb[0].mxu0 %v173
    %v387 = vpop.f32.mrb[0].mxu0
    %v388 = vadd.f32 %v125, %v387
    %v389 = vpop.f32.mrb[0].mxu0
    %v390 = vadd.f32 %v129, %v389
    %v391 = vpop.f32.mrb[0].mxu0
    %v392 = vadd.f32 %v125, %v391
    %v393 = vpop.f32.mrb[0].mxu0
    %v394 = vadd.f32 %v129, %v393
    %395 = vmatprep.mubr.bf16.mxu0 0
    %396 = vmatmul.mubr.bf16.gmra.mrb[0].mxu0 %v174
    %v397 = vpop.f32.mrb[0].mxu0
    %v398 = vadd.f32 %v125, %v397
    %v399 = vpop.f32.mrb[0].mxu0
    %v400 = vadd.f32 %v129, %v399
    %v401 = vpop.f32.mrb[0].mxu0
    %v402 = vadd.f32 %v125, %v401
    %v403 = vpop.f32.mrb[0].mxu0
    %v404 = vadd.f32 %v129, %v403
    %405 = vmatprep.mubr.bf16.mxu0 0
    %406 = vmatmul.mubr.bf16.gmra.mrb[0].mxu0 %v175
    %v407 = vpop.f32.mrb[0].mxu0
    %v408 = vadd.f32 %v125, %v407
    %v409 = vpop.f32.mrb[0].mxu0
    %v410 = vadd.f32 %v129, %v409
    %v411 = vpop.f32.mrb[0].mxu0
    %v412 = vadd.f32 %v125, %v411
    %v413 = vpop.f32.mrb[0].mxu0
    %v414 = vadd.f32 %v129, %v413
    %415 = vmatprep.mubr.bf16.mxu0 0
    %416 = vmatmul.mubr.bf16.gmra.mrb[0].mxu0 %v176
    %v417 = vpop.f32.mrb[0].mxu0
    %v418 = vadd.f32 %v125, %v417
    %v419 = vpop.f32.mrb[0].mxu0
    %v420 = vadd.f32 %v129, %v419
    %v421 = vpop.f32.mrb[0].mxu0
    %v422 = vadd.f32 %v125, %v421
    %v423 = vpop.f32.mrb[0].mxu0
    %v424 = vadd.f32 %v129, %v423
    %425 = vdwg.mxu0
    %426 = vmatprep.subr.bf16.mxu0 0
    %427 = vmatpush1.bf16.msra.mxu0 %v267
    %428 = vmatprep.subr.bf16.mxu0 0
    %429 = vmatpush1.bf16.msra.mxu0 %v270
    %430 = vmatprep.subr.bf16.mxu0 0
    %431 = vmatpush1.bf16.msra.mxu0 %v273
    %432 = vmatprep.subr.bf16.mxu0 0
    %433 = vmatpush1.bf16.msra.mxu0 %v276
    %434 = vmatprep.subr.bf16.mxu0 0
    %435 = vmatpush1.bf16.msra.mxu0 %v279
    %436 = vmatprep.subr.bf16.mxu0 0
    %437 = vmatpush1.bf16.msra.mxu0 %v282
    %438 = vmatprep.subr.bf16.mxu0 0
    %439 = vmatpush1.bf16.msra.mxu0 %v285
    %440 = vmatprep.subr.bf16.mxu0 0
    %441 = vmatpush1.bf16.msra.mxu0 %v288
    %442 = vmatprep.subr.bf16.mxu0 0
    %443 = vmatpush1.bf16.msra.mxu0 0
    %444 = vmatprep.subr.bf16.mxu0 0
    %445 = vmatpush1.bf16.msra.mxu0 0
    %446 = vmatprep.subr.bf16.mxu0 0
    %447 = vmatpush1.bf16.msra.mxu0 0
    %448 = vmatprep.subr.bf16.mxu0 0
    %449 = vmatpush1.bf16.msra.mxu0 0
    %450 = vmatprep.subr.bf16.mxu0 0
    %451 = vmatpush1.bf16.msra.mxu0 0
    %452 = vmatprep.subr.bf16.mxu0 0
    %453 = vmatpush1.bf16.msra.mxu0 0
    %454 = vmatprep.subr.bf16.mxu0 0
    %455 = vmatpush1.bf16.msra.mxu0 0
    %456 = vmatprep.subr.bf16.mxu0 0
    %457 = vmatpush1.bf16.msra.mxu0 0
    %458 = vmatprep.mubr.bf16.mxu0 0
    %459 = vmatmul.mubr.bf16.gmra.mrb[0].mxu0 %v169
    %v460 = vpop.f32.mrb[0].mxu0
    %v461 = vadd.f32 %v133, %v460
    %v462 = vpop.f32.mrb[0].mxu0
    %v463 = vpop.f32.mrb[0].mxu0
    %v464 = vadd.f32 %v133, %v463
    %v465 = vpop.f32.mrb[0].mxu0
    %466 = vmatprep.mubr.bf16.mxu0 0
    %467 = vmatmul.mubr.bf16.gmra.mrb[0].mxu0 %v170
    %v468 = vpop.f32.mrb[0].mxu0
    %v469 = vadd.f32 %v133, %v468
    %v470 = vpop.f32.mrb[0].mxu0
    %v471 = vpop.f32.mrb[0].mxu0
    %v472 = vadd.f32 %v133, %v471
    %v473 = vpop.f32.mrb[0].mxu0
    %474 = vmatprep.mubr.bf16.mxu0 0
    %475 = vmatmul.mubr.bf16.gmra.mrb[0].mxu0 %v171
    %v476 = vpop.f32.mrb[0].mxu0
    %v477 = vadd.f32 %v133, %v476
    %v478 = vpop.f32.mrb[0].mxu0
    %v479 = vpop.f32.mrb[0].mxu0
    %v480 = vadd.f32 %v133, %v479
    %v481 = vpop.f32.mrb[0].mxu0
    %482 = vmatprep.mubr.bf16.mxu0 0
    %483 = vmatmul.mubr.bf16.gmra.mrb[0].mxu0 %v172
    %v484 = vpop.f32.mrb[0].mxu0
    %v485 = vadd.f32 %v133, %v484
    %v486 = vpop.f32.mrb[0].mxu0
    %v487 = vpop.f32.mrb[0].mxu0
    %v488 = vadd.f32 %v133, %v487
    %v489 = vpop.f32.mrb[0].mxu0
    %490 = vmatprep.mubr.bf16.mxu0 0
    %491 = vmatmul.mubr.bf16.gmra.mrb[0].mxu0 %v173
    %v492 = vpop.f32.mrb[0].mxu0
    %v493 = vadd.f32 %v133, %v492
    %v494 = vpop.f32.mrb[0].mxu0
    %v495 = vpop.f32.mrb[0].mxu0
    %v496 = vadd.f32 %v133, %v495
    %v497 = vpop.f32.mrb[0].mxu0
    %498 = vmatprep.mubr.bf16.mxu0 0
    %499 = vmatmul.mubr.bf16.gmra.mrb[0].mxu0 %v174
    %v500 = vpop.f32.mrb[0].mxu0
    %v501 = vadd.f32 %v133, %v500
    %v502 = vpop.f32.mrb[0].mxu0
    %v503 = vpop.f32.mrb[0].mxu0
    %v504 = vadd.f32 %v133, %v503
    %v505 = vpop.f32.mrb[0].mxu0
    %506 = vmatprep.mubr.bf16.mxu0 0
    %507 = vmatmul.mubr.bf16.gmra.mrb[0].mxu0 %v175
    %v508 = vpop.f32.mrb[0].mxu0
    %v509 = vadd.f32 %v133, %v508
    %v510 = vpop.f32.mrb[0].mxu0
    %v511 = vpop.f32.mrb[0].mxu0
    %v512 = vadd.f32 %v133, %v511
    %v513 = vpop.f32.mrb[0].mxu0
    %514 = vmatprep.mubr.bf16.mxu0 0
    %515 = vmatmul.mubr.bf16.gmra.mrb[0].mxu0 %v176
    %v516 = vpop.f32.mrb[0].mxu0
    %v517 = vadd.f32 %v133, %v516
    %v518 = vpop.f32.mrb[0].mxu0
    %v519 = vpop.f32.mrb[0].mxu0
    %v520 = vadd.f32 %v133, %v519
    %v521 = vpop.f32.mrb[0].mxu0
    %522 = vdwg.mxu0
    %523 = vst [vmem:[#allocation2] sm:$0xff] %v348
    %524 = vst [vmem:[#allocation2 + $0x8] sm:$0xff] %v350
    %525 = vst [vmem:[#allocation2 + $0x10] sm:$0xff] %v461
    %526 = vst [vmem:[#allocation2 + $0x18] sm:$0xff] %v352
    %527 = vst [vmem:[#allocation2 + $0x20] sm:$0xff] %v354
    %528 = vst [vmem:[#allocation2 + $0x28] sm:$0xff] %v464
    %529 = vst [vmem:[#allocation2 + $0x30] sm:$0xff] %v358
    %530 = vst [vmem:[#allocation2 + $0x38] sm:$0xff] %v360
    %531 = vst [vmem:[#allocation2 + $0x40] sm:$0xff] %v469
    %532 = vst [vmem:[#allocation2 + $0x48] sm:$0xff] %v362
    %533 = vst [vmem:[#allocation2 + $0x50] sm:$0xff] %v364
    %534 = vst [vmem:[#allocation2 + $0x58] sm:$0xff] %v472
    %535 = vst [vmem:[#allocation2 + $0x60] sm:$0xff] %v368
    %536 = vst [vmem:[#allocation2 + $0x68] sm:$0xff] %v370
    %537 = vst [vmem:[#allocation2 + $0x70] sm:$0xff] %v477
    %538 = vst [vmem:[#allocation2 + $0x78] sm:$0xff] %v372
    %539 = vst [vmem:[#allocation2 + $0x80] sm:$0xff] %v374
    %540 = vst [vmem:[#allocation2 + $0x88] sm:$0xff] %v480
    %541 = vst [vmem:[#allocation2 + $0x90] sm:$0xff] %v378
    %542 = vst [vmem:[#allocation2 + $0x98] sm:$0xff] %v380
    %543 = vst [vmem:[#allocation2 + $0xa0] sm:$0xff] %v485
    %544 = vst [vmem:[#allocation2 + $0xa8] sm:$0xff] %v382
    %545 = vst [vmem:[#allocation2 + $0xb0] sm:$0xff] %v384
    %546 = vst [vmem:[#allocation2 + $0xb8] sm:$0xff] %v488
    %547 = vst [vmem:[#allocation2 + $0xc0] sm:$0xff] %v388
    %548 = vst [vmem:[#allocation2 + $0xc8] sm:$0xff] %v390
    %549 = vst [vmem:[#allocation2 + $0xd0] sm:$0xff] %v493
    %550 = vst [vmem:[#allocation2 + $0xd8] sm:$0xff] %v392
    %551 = vst [vmem:[#allocation2 + $0xe0] sm:$0xff] %v394
    %552 = vst [vmem:[#allocation2 + $0xe8] sm:$0xff] %v496
    %553 = vst [vmem:[#allocation2 + $0xf0] sm:$0xff] %v398
    %554 = vst [vmem:[#allocation2 + $0xf8] sm:$0xff] %v400
    %555 = vst [vmem:[#allocation2 + $0x100] sm:$0xff] %v501
    %556 = vst [vmem:[#allocation2 + $0x108] sm:$0xff] %v402
    %557 = vst [vmem:[#allocation2 + $0x110] sm:$0xff] %v404
    %558 = vst [vmem:[#allocation2 + $0x118] sm:$0xff] %v504
    %559 = vst [vmem:[#allocation2 + $0x120] sm:$0xff] %v408
    %560 = vst [vmem:[#allocation2 + $0x128] sm:$0xff] %v410
    %561 = vst [vmem:[#allocation2 + $0x130] sm:$0xff] %v509
    %562 = vst [vmem:[#allocation2 + $0x138] sm:$0xff] %v412
    %563 = vst [vmem:[#allocation2 + $0x140] sm:$0xff] %v414
    %564 = vst [vmem:[#allocation2 + $0x148] sm:$0xff] %v512
    %565 = vst [vmem:[#allocation2 + $0x150] sm:$0xff] %v418
    %566 = vst [vmem:[#allocation2 + $0x158] sm:$0xff] %v420
    %567 = vst [vmem:[#allocation2 + $0x160] sm:$0xff] %v517
    %568 = vst [vmem:[#allocation2 + $0x168] sm:$0xff] %v422
    %569 = vst [vmem:[#allocation2 + $0x170] sm:$0xff] %v424
    %570 = vst [vmem:[#allocation2 + $0x178] sm:$0xff] %v520
    %v571 = vld [vmem:[#allocation8] sm:$0xff]
    %v572 = vld [vmem:[#allocation8 + $0x8] sm:$0xf]
    %v573 = vld [vmem:[#allocation8 + $0xc] sm:$0xff]
    %v574 = vld [vmem:[#allocation8 + $0x14] sm:$0xf]
    %v575 = vld [vmem:[#allocation8 + $0x18] sm:$0xff]
    %v576 = vld [vmem:[#allocation8 + $0x20] sm:$0xf]
    %v577 = vld [vmem:[#allocation8 + $0x24] sm:$0xff]
    %v578 = vld [vmem:[#allocation8 + $0x2c] sm:$0xf]
    %v579 = vld [vmem:[#allocation8 + $0x30] sm:$0xff]
    %v580 = vld [vmem:[#allocation8 + $0x38] sm:$0xf]
    %v581 = vld [vmem:[#allocation8 + $0x3c] sm:$0xff]
    %v582 = vld [vmem:[#allocation8 + $0x44] sm:$0xf]
    %v583 = vld [vmem:[#allocation8 + $0x48] sm:$0xff]
    %v584 = vld [vmem:[#allocation8 + $0x50] sm:$0xf]
    %v585 = vld [vmem:[#allocation8 + $0x54] sm:$0xff]
    %v586 = vld [vmem:[#allocation8 + $0x5c] sm:$0xf]
    %v587 = vld [vmem:[#allocation8 + $0x60] sm:$0xff]
    %v588 = vld [vmem:[#allocation8 + $0x68] sm:$0xf]
    %v589 = vld [vmem:[#allocation8 + $0x6c] sm:$0xff]
    %v590 = vld [vmem:[#allocation8 + $0x74] sm:$0xf]
    %v591 = vld [vmem:[#allocation8 + $0x78] sm:$0xff]
    %v592 = vld [vmem:[#allocation8 + $0x80] sm:$0xf]
    %v593 = vld [vmem:[#allocation8 + $0x84] sm:$0xff]
    %v594 = vld [vmem:[#allocation8 + $0x8c] sm:$0xf]
    %v595 = vld [vmem:[#allocation8 + $0x90] sm:$0xff]
    %v596 = vld [vmem:[#allocation8 + $0x98] sm:$0xf]
    %v597 = vld [vmem:[#allocation8 + $0x9c] sm:$0xff]
    %v598 = vld [vmem:[#allocation8 + $0xa4] sm:$0xf]
    %v599 = vld [vmem:[#allocation8 + $0xa8] sm:$0xff]
    %v600 = vld [vmem:[#allocation8 + $0xb0] sm:$0xf]
    %v601 = vld [vmem:[#allocation8 + $0xb4] sm:$0xff]
    %v602 = vld [vmem:[#allocation8 + $0xbc] sm:$0xf]
    %v603 = vld [vmem:[%s6] sm:$0x1]
    %v605 = vlaneseq
    %v606 = vshrl.u32 %v605, 7
    %v607 = vsub.s32 0, %v606
    %v608 = vrot.slane %v603, %v607
    %v610 = vld [vmem:[%s1] sm:$0xff]
    %v611 = vld [vmem:[%s1 + $0x8] sm:$0xff]
    %v612 = vld [vmem:[%s2] sm:$0xff]
    %v613 = vld [vmem:[%s2 + $0x8] sm:$0xff]
    %v614 = vld [vmem:[#allocation2] sm:$0xff]
    %v615 = vld [vmem:[#allocation2 + $0x8] sm:$0xff]
    %v616 = vld [vmem:[#allocation2 + $0x10] sm:$0xff]
    %v617 = vld [vmem:[#allocation2 + $0x18] sm:$0xff]
    %v618 = vld [vmem:[#allocation2 + $0x20] sm:$0xff]
    %v619 = vld [vmem:[#allocation2 + $0x28] sm:$0xff]
    %v620 = vpack.c.bf16 %v613, %v612
    %v653 = vunpack.c.l.b16 %v571
    %v654 = vunpack.c.h.b16 %v571
    %v655 = vunpack.c.l.b16 %v572
    %v656 = vunpack.c.l.b16 %v573
    %v657 = vunpack.c.h.b16 %v573
    %v658 = vunpack.c.l.b16 %v574
    %v659 = vunpack.c.l.b16 %v575
    %v660 = vunpack.c.h.b16 %v575
    %v661 = vunpack.c.l.b16 %v576
    %v662 = vunpack.c.l.b16 %v577
    %v663 = vunpack.c.h.b16 %v577
    %v664 = vunpack.c.l.b16 %v578
    %v665 = vunpack.c.l.b16 %v579
    %v666 = vunpack.c.h.b16 %v579
    %v667 = vunpack.c.l.b16 %v580
    %v668 = vunpack.c.l.b16 %v581
    %v669 = vunpack.c.h.b16 %v581
    %v670 = vunpack.c.l.b16 %v582
    %v671 = vunpack.c.l.b16 %v583
    %v672 = vunpack.c.h.b16 %v583
    %v673 = vunpack.c.l.b16 %v584
    %v674 = vunpack.c.l.b16 %v585
    %v675 = vunpack.c.h.b16 %v585
    %v676 = vunpack.c.l.b16 %v586
    %v677 = vunpack.c.l.b16 %v587
    %v678 = vunpack.c.h.b16 %v587
    %v679 = vunpack.c.l.b16 %v588
    %v680 = vunpack.c.l.b16 %v589
    %v681 = vunpack.c.h.b16 %v589
    %v682 = vunpack.c.l.b16 %v590
    %v683 = vunpack.c.l.b16 %v591
    %v684 = vunpack.c.h.b16 %v591
    %v685 = vunpack.c.l.b16 %v592
    %v686 = vunpack.c.l.b16 %v593
    %v687 = vunpack.c.h.b16 %v593
    %v688 = vunpack.c.l.b16 %v594
    %v689 = vunpack.c.l.b16 %v595
    %v690 = vunpack.c.h.b16 %v595
    %v691 = vunpack.c.l.b16 %v596
    %v692 = vunpack.c.l.b16 %v597
    %v693 = vunpack.c.h.b16 %v597
    %v694 = vunpack.c.l.b16 %v598
    %v695 = vunpack.c.l.b16 %v599
    %v696 = vunpack.c.h.b16 %v599
    %v697 = vunpack.c.l.b16 %v600
    %v698 = vunpack.c.l.b16 %v601
    %v699 = vunpack.c.h.b16 %v601
    %v700 = vunpack.c.l.b16 %v602
    %v701 = vpack.c.b16 %v656, %v653
    %v702 = vpack.c.b16 %v657, %v654
    %v703 = vpack.c.b16 %v658, %v655
    %v704 = vpack.c.b16 %v662, %v659
    %v705 = vpack.c.b16 %v663, %v660
    %v706 = vpack.c.b16 %v664, %v661
    %v707 = vpack.c.b16 %v668, %v665
    %v708 = vpack.c.b16 %v669, %v666
    %v709 = vpack.c.b16 %v670, %v667
    %v710 = vpack.c.b16 %v674, %v671
    %v711 = vpack.c.b16 %v675, %v672
    %v712 = vpack.c.b16 %v676, %v673
    %v713 = vpack.c.b16 %v680, %v677
    %v714 = vpack.c.b16 %v681, %v678
    %v715 = vpack.c.b16 %v682, %v679
    %v716 = vpack.c.b16 %v686, %v683
    %v717 = vpack.c.b16 %v687, %v684
    %v718 = vpack.c.b16 %v688, %v685
    %v719 = vpack.c.b16 %v692, %v689
    %v720 = vpack.c.b16 %v693, %v690
    %v721 = vpack.c.b16 %v694, %v691
    %v722 = vpack.c.b16 %v698, %v695
    %v723 = vpack.c.b16 %v699, %v696
    %v724 = vpack.c.b16 %v700, %v697
    %749 = vmatprep.subr.bf16.mxu0 %v702
    %750 = vmatpush1.bf16.msra.mxu0 %v701
    %751 = vmatprep.subr.bf16.mxu0 %v705
    %752 = vmatpush1.bf16.msra.mxu0 %v704
    %753 = vmatprep.subr.bf16.mxu0 %v708
    %754 = vmatpush1.bf16.msra.mxu0 %v707
    %755 = vmatprep.subr.bf16.mxu0 %v711
    %756 = vmatpush1.bf16.msra.mxu0 %v710
    %757 = vmatprep.subr.bf16.mxu0 %v714
    %758 = vmatpush1.bf16.msra.mxu0 %v713
    %759 = vmatprep.subr.bf16.mxu0 %v717
    %760 = vmatpush1.bf16.msra.mxu0 %v716
    %761 = vmatprep.subr.bf16.mxu0 %v720
    %762 = vmatpush1.bf16.msra.mxu0 %v719
    %763 = vmatprep.subr.bf16.mxu0 %v723
    %764 = vmatpush1.bf16.msra.mxu0 %v722
    %765 = vmatprep.subr.bf16.mxu0 0
    %766 = vmatpush1.bf16.msra.mxu0 0
    %767 = vmatprep.subr.bf16.mxu0 0
    %768 = vmatpush1.bf16.msra.mxu0 0
    %769 = vmatprep.subr.bf16.mxu0 0
    %770 = vmatpush1.bf16.msra.mxu0 0
    %771 = vmatprep.subr.bf16.mxu0 0
    %772 = vmatpush1.bf16.msra.mxu0 0
    %773 = vmatprep.subr.bf16.mxu0 0
    %774 = vmatpush1.bf16.msra.mxu0 0
    %775 = vmatprep.subr.bf16.mxu0 0
    %776 = vmatpush1.bf16.msra.mxu0 0
    %777 = vmatprep.subr.bf16.mxu0 0
    %778 = vmatpush1.bf16.msra.mxu0 0
    %779 = vmatprep.subr.bf16.mxu0 0
    %780 = vmatpush1.bf16.msra.mxu0 0
    %781 = vmatprep.mubr.bf16.mxu0 0
    %782 = vmatmul.mubr.bf16.gmra.mrb[0].mxu0 %v620
    %v783 = vpop.f32.mrb[0].mxu0
    %v784 = vadd.f32 0.0, %v783
    %v785 = vpop.f32.mrb[0].mxu0
    %v786 = vadd.f32 0.0, %v785
    %v787 = vpop.f32.mrb[0].mxu0
    %v788 = vadd.f32 0.0, %v787
    %v789 = vpop.f32.mrb[0].mxu0
    %v790 = vadd.f32 0.0, %v789
    %791 = vdwg.mxu0
    %792 = vmatprep.subr.bf16.mxu0 0
    %793 = vmatpush1.bf16.msra.mxu0 %v703
    %794 = vmatprep.subr.bf16.mxu0 0
    %795 = vmatpush1.bf16.msra.mxu0 %v706
    %796 = vmatprep.subr.bf16.mxu0 0
    %797 = vmatpush1.bf16.msra.mxu0 %v709
    %798 = vmatprep.subr.bf16.mxu0 0
    %799 = vmatpush1.bf16.msra.mxu0 %v712
    %800 = vmatprep.subr.bf16.mxu0 0
    %801 = vmatpush1.bf16.msra.mxu0 %v715
    %802 = vmatprep.subr.bf16.mxu0 0
    %803 = vmatpush1.bf16.msra.mxu0 %v718
    %804 = vmatprep.subr.bf16.mxu0 0
    %805 = vmatpush1.bf16.msra.mxu0 %v721
    %806 = vmatprep.subr.bf16.mxu0 0
    %807 = vmatpush1.bf16.msra.mxu0 %v724
    %808 = vmatprep.subr.bf16.mxu0 0
    %809 = vmatpush1.bf16.msra.mxu0 0
    %810 = vmatprep.subr.bf16.mxu0 0
    %811 = vmatpush1.bf16.msra.mxu0 0
    %812 = vmatprep.subr.bf16.mxu0 0
    %813 = vmatpush1.bf16.msra.mxu0 0
    %814 = vmatprep.subr.bf16.mxu0 0
    %815 = vmatpush1.bf16.msra.mxu0 0
    %816 = vmatprep.subr.bf16.mxu0 0
    %817 = vmatpush1.bf16.msra.mxu0 0
    %818 = vmatprep.subr.bf16.mxu0 0
    %819 = vmatpush1.bf16.msra.mxu0 0
    %820 = vmatprep.subr.bf16.mxu0 0
    %821 = vmatpush1.bf16.msra.mxu0 0
    %822 = vmatprep.subr.bf16.mxu0 0
    %823 = vmatpush1.bf16.msra.mxu0 0
    %824 = vmatprep.mubr.bf16.mxu0 0
    %825 = vmatmul.mubr.bf16.gmra.mrb[0].mxu0 %v620
    %v826 = vpop.f32.mrb[0].mxu0
    %v827 = vadd.f32 0.0, %v826
    %v828 = vpop.f32.mrb[0].mxu0
    %v829 = vpop.f32.mrb[0].mxu0
    %v830 = vadd.f32 0.0, %v829
    %v831 = vpop.f32.mrb[0].mxu0
    %832 = vdwg.mxu0
    %v833 = vadd.f32 %v614, %v784
    %v834 = vadd.f32 %v617, %v788
    %v835 = vxor.u32 %v833, 2147483648
    %v836 = vxor.u32 %v834, 2147483648
    %v837 = vmul.f32 %v835, 1.442695
    %v838 = vpow.pop %v837
    %v839 = vmul.f32 %v836, 1.442695
    %v840 = vpow.pop %v839
    %v841 = vadd.f32 %v838, 1.0
    %v842 = vadd.f32 %v840, 1.0
    %v843 = vrcp.pop %v841
    %v844 = vmul.f32 1.0, %v843
    %v845 = vrcp.pop %v842
    %v846 = vmul.f32 1.0, %v845
    %v847 = vadd.f32 %v615, %v786
    %v848 = vadd.f32 %v618, %v790
    %v849 = vxor.u32 %v847, 2147483648
    %v850 = vxor.u32 %v848, 2147483648
    %v851 = vmul.f32 %v849, 1.442695
    %v852 = vpow.pop %v851
    %v853 = vmul.f32 %v850, 1.442695
    %v854 = vpow.pop %v853
    %v855 = vadd.f32 %v852, 1.0
    %v856 = vadd.f32 %v854, 1.0
    %v857 = vrcp.pop %v855
    %v858 = vmul.f32 1.0, %v857
    %v859 = vrcp.pop %v856
    %v860 = vmul.f32 1.0, %v859
    %v861 = vadd.f32 %v827, %v608
    %v862 = vadd.f32 %v830, %v608
    %v863 = vmul.f32 %v844, %v861
    %v864 = vmul.f32 %v846, %v862
    %v865 = vadd.f32 %v616, %v863
    %v866 = vadd.f32 %v619, %v864
    %v867 = vtanh.pop %v865
    %v868 = vtanh.pop %v866
    %v869 = vsub.f32 1.0, %v858
    %v870 = vsub.f32 1.0, %v860
    %v871 = vmul.f32 %v869, %v867
    %v872 = vmul.f32 %v870, %v868
    %v873 = vmul.f32 %v858, %v612
    %v874 = vmul.f32 %v860, %v613
    %v875 = vadd.f32 %v871, %v873
    %v876 = vadd.f32 %v872, %v874
    %vm877 = vcmp.gt.s32.totalorder %v610, 0
    %vm878 = vcmp.gt.s32.totalorder %v611, 0
    %v879 = vsel %vm877, 1, 0
    %v880 = vsel %vm878, 1, 0
    %881 = vset.pattern.permute.xlu0 0
    %882 = vperm.xlu0 %881, %v879
    %v883 = vpop.permute.xlu0 %882
    %884 = vset.pattern.permute.xlu0 0
    %885 = vperm.xlu0 %884, %v880
    %v886 = vpop.permute.xlu0 %885
    %vm887 = vcmp.eq.s32.totalorder %v883, 1
    %vm888 = vcmp.eq.s32.totalorder %v886, 1
    %v889 = vsel %vm887, %v875, 0.0
    %v890 = vsel %vm888, %v876, 0.0
    %v891 = vsel %vm887, %v875, %v612
    %v892 = vsel %vm888, %v876, %v613
    %v893 = vadd.f32 %v889, 0.0
    %v894 = vadd.f32 %v890, 0.0
    %s895 = scalar_lea.vmem [#allocation2], 48
    %v896 = vld [vmem:[%s895] sm:$0xff]
    %v897 = vld [vmem:[%s895 + $0x8] sm:$0xff]
    %v898 = vld [vmem:[%s895 + $0x10] sm:$0xff]
    %v899 = vld [vmem:[%s895 + $0x18] sm:$0xff]
    %v900 = vld [vmem:[%s895 + $0x20] sm:$0xff]
    %v901 = vld [vmem:[%s895 + $0x28] sm:$0xff]
    %v902 = vpack.c.bf16 %v892, %v891
    %903 = vmatprep.subr.bf16.mxu0 %v702
    %904 = vmatpush1.bf16.msra.mxu0 %v701
    %905 = vmatprep.subr.bf16.mxu0 %v705
    %906 = vmatpush1.bf16.msra.mxu0 %v704
    %907 = vmatprep.subr.bf16.mxu0 %v708
    %908 = vmatpush1.bf16.msra.mxu0 %v707
    %909 = vmatprep.subr.bf16.mxu0 %v711
    %910 = vmatpush1.bf16.msra.mxu0 %v710
    %911 = vmatprep.subr.bf16.mxu0 %v714
    %912 = vmatpush1.bf16.msra.mxu0 %v713
    %913 = vmatprep.subr.bf16.mxu0 %v717
    %914 = vmatpush1.bf16.msra.mxu0 %v716
    %915 = vmatprep.subr.bf16.mxu0 %v720
    %916 = vmatpush1.bf16.msra.mxu0 %v719
    %917 = vmatprep.subr.bf16.mxu0 %v723
    %918 = vmatpush1.bf16.msra.mxu0 %v722
    %919 = vmatprep.subr.bf16.mxu0 0
    %920 = vmatpush1.bf16.msra.mxu0 0
    %921 = vmatprep.subr.bf16.mxu0 0
    %922 = vmatpush1.bf16.msra.mxu0 0
    %923 = vmatprep.subr.bf16.mxu0 0
    %924 = vmatpush1.bf16.msra.mxu0 0
    %925 = vmatprep.subr.bf16.mxu0 0
    %926 = vmatpush1.bf16.msra.mxu0 0
    %927 = vmatprep.subr.bf16.mxu0 0
    %928 = vmatpush1.bf16.msra.mxu0 0
    %929 = vmatprep.subr.bf16.mxu0 0
    %930 = vmatpush1.bf16.msra.mxu0 0
    %931 = vmatprep.subr.bf16.mxu0 0
    %932 = vmatpush1.bf16.msra.mxu0 0
    %933 = vmatprep.subr.bf16.mxu0 0
    %934 = vmatpush1.bf16.msra.mxu0 0
    %935 = vmatprep.mubr.bf16.mxu0 0
    %936 = vmatmul.mubr.bf16.gmra.mrb[0].mxu0 %v902
    %v937 = vpop.f32.mrb[0].mxu0
    %v938 = vadd.f32 0.0, %v937
    %v939 = vpop.f32.mrb[0].mxu0
    %v940 = vadd.f32 0.0, %v939
    %v941 = vpop.f32.mrb[0].mxu0
    %v942 = vadd.f32 0.0, %v941
    %v943 = vpop.f32.mrb[0].mxu0
    %v944 = vadd.f32 0.0, %v943
    %945 = vdwg.mxu0
    %946 = vmatprep.subr.bf16.mxu0 0
    %947 = vmatpush1.bf16.msra.mxu0 %v703
    %948 = vmatprep.subr.bf16.mxu0 0
    %949 = vmatpush1.bf16.msra.mxu0 %v706
    %950 = vmatprep.subr.bf16.mxu0 0
    %951 = vmatpush1.bf16.msra.mxu0 %v709
    %952 = vmatprep.subr.bf16.mxu0 0
    %953 = vmatpush1.bf16.msra.mxu0 %v712
    %954 = vmatprep.subr.bf16.mxu0 0
    %955 = vmatpush1.bf16.msra.mxu0 %v715
    %956 = vmatprep.subr.bf16.mxu0 0
    %957 = vmatpush1.bf16.msra.mxu0 %v718
    %958 = vmatprep.subr.bf16.mxu0 0
    %959 = vmatpush1.bf16.msra.mxu0 %v721
    %960 = vmatprep.subr.bf16.mxu0 0
    %961 = vmatpush1.bf16.msra.mxu0 %v724
    %962 = vmatprep.subr.bf16.mxu0 0
    %963 = vmatpush1.bf16.msra.mxu0 0
    %964 = vmatprep.subr.bf16.mxu0 0
    %965 = vmatpush1.bf16.msra.mxu0 0
    %966 = vmatprep.subr.bf16.mxu0 0
    %967 = vmatpush1.bf16.msra.mxu0 0
    %968 = vmatprep.subr.bf16.mxu0 0
    %969 = vmatpush1.bf16.msra.mxu0 0
    %970 = vmatprep.subr.bf16.mxu0 0
    %971 = vmatpush1.bf16.msra.mxu0 0
    %972 = vmatprep.subr.bf16.mxu0 0
    %973 = vmatpush1.bf16.msra.mxu0 0
    %974 = vmatprep.subr.bf16.mxu0 0
    %975 = vmatpush1.bf16.msra.mxu0 0
    %976 = vmatprep.subr.bf16.mxu0 0
    %977 = vmatpush1.bf16.msra.mxu0 0
    %978 = vmatprep.mubr.bf16.mxu0 0
    %979 = vmatmul.mubr.bf16.gmra.mrb[0].mxu0 %v902
    %v980 = vpop.f32.mrb[0].mxu0
    %v981 = vadd.f32 0.0, %v980
    %v982 = vpop.f32.mrb[0].mxu0
    %v983 = vpop.f32.mrb[0].mxu0
    %v984 = vadd.f32 0.0, %v983
    %v985 = vpop.f32.mrb[0].mxu0
    %986 = vdwg.mxu0
    %v987 = vadd.f32 %v896, %v938
    %v988 = vadd.f32 %v899, %v942
    %v989 = vxor.u32 %v987, 2147483648
    %v990 = vxor.u32 %v988, 2147483648
    %v991 = vmul.f32 %v989, 1.442695
    %v992 = vpow.pop %v991
    %v993 = vmul.f32 %v990, 1.442695
    %v994 = vpow.pop %v993
    %v995 = vadd.f32 %v992, 1.0
    %v996 = vadd.f32 %v994, 1.0
    %v997 = vrcp.pop %v995
    %v998 = vmul.f32 1.0, %v997
    %v999 = vrcp.pop %v996
    %v1000 = vmul.f32 1.0, %v999
    %v1001 = vadd.f32 %v897, %v940
    %v1002 = vadd.f32 %v900, %v944
    %v1003 = vxor.u32 %v1001, 2147483648
    %v1004 = vxor.u32 %v1002, 2147483648
    %v1005 = vmul.f32 %v1003, 1.442695
    %v1006 = vpow.pop %v1005
    %v1007 = vmul.f32 %v1004, 1.442695
    %v1008 = vpow.pop %v1007
    %v1009 = vadd.f32 %v1006, 1.0
    %v1010 = vadd.f32 %v1008, 1.0
    %v1011 = vrcp.pop %v1009
    %v1012 = vmul.f32 1.0, %v1011
    %v1013 = vrcp.pop %v1010
    %v1014 = vmul.f32 1.0, %v1013
    %v1015 = vadd.f32 %v981, %v608
    %v1016 = vadd.f32 %v984, %v608
    %v1017 = vmul.f32 %v998, %v1015
    %v1018 = vmul.f32 %v1000, %v1016
    %v1019 = vadd.f32 %v898, %v1017
    %v1020 = vadd.f32 %v901, %v1018
    %v1021 = vtanh.pop %v1019
    %v1022 = vtanh.pop %v1020
    %v1023 = vsub.f32 1.0, %v1012
    %v1024 = vsub.f32 1.0, %v1014
    %v1025 = vmul.f32 %v1023, %v1021
    %v1026 = vmul.f32 %v1024, %v1022
    %v1027 = vmul.f32 %v1012, %v891
    %v1028 = vmul.f32 %v1014, %v892
    %v1029 = vadd.f32 %v1025, %v1027
    %v1030 = vadd.f32 %v1026, %v1028
    %vm1031 = vcmp.gt.s32.totalorder %v610, 1
    %vm1032 = vcmp.gt.s32.totalorder %v611, 1
    %v1033 = vsel %vm1031, 1, 0
    %v1034 = vsel %vm1032, 1, 0
    %1035 = vset.pattern.permute.xlu0 0
    %1036 = vperm.xlu0 %1035, %v1033
    %v1037 = vpop.permute.xlu0 %1036
    %1038 = vset.pattern.permute.xlu0 0
    %1039 = vperm.xlu0 %1038, %v1034
    %v1040 = vpop.permute.xlu0 %1039
    %vm1041 = vcmp.eq.s32.totalorder %v1037, 1
    %vm1042 = vcmp.eq.s32.totalorder %v1040, 1
    %v1043 = vsel %vm1041, %v1029, 0.0
    %v1044 = vsel %vm1042, %v1030, 0.0
    %v1045 = vsel %vm1041, %v1029, %v891
    %v1046 = vsel %vm1042, %v1030, %v892
    %v1047 = vadd.f32 %v893, %v1043
    %v1048 = vadd.f32 %v894, %v1044
    %s1049 = scalar_lea.vmem [#allocation2], 96
    %v1050 = vld [vmem:[%s1049] sm:$0xff]
    %v1051 = vld [vmem:[%s1049 + $0x8] sm:$0xff]
    %v1052 = vld [vmem:[%s1049 + $0x10] sm:$0xff]
    %v1053 = vld [vmem:[%s1049 + $0x18] sm:$0xff]
    %v1054 = vld [vmem:[%s1049 + $0x20] sm:$0xff]
    %v1055 = vld [vmem:[%s1049 + $0x28] sm:$0xff]
    %v1056 = vpack.c.bf16 %v1046, %v1045
    %1057 = vmatprep.subr.bf16.mxu0 %v702
    %1058 = vmatpush1.bf16.msra.mxu0 %v701
    %1059 = vmatprep.subr.bf16.mxu0 %v705
    %1060 = vmatpush1.bf16.msra.mxu0 %v704
    %1061 = vmatprep.subr.bf16.mxu0 %v708
    %1062 = vmatpush1.bf16.msra.mxu0 %v707
    %1063 = vmatprep.subr.bf16.mxu0 %v711
    %1064 = vmatpush1.bf16.msra.mxu0 %v710
    %1065 = vmatprep.subr.bf16.mxu0 %v714
    %1066 = vmatpush1.bf16.msra.mxu0 %v713
    %1067 = vmatprep.subr.bf16.mxu0 %v717
    %1068 = vmatpush1.bf16.msra.mxu0 %v716
    %1069 = vmatprep.subr.bf16.mxu0 %v720
    %1070 = vmatpush1.bf16.msra.mxu0 %v719
    %1071 = vmatprep.subr.bf16.mxu0 %v723
    %1072 = vmatpush1.bf16.msra.mxu0 %v722
    %1073 = vmatprep.subr.bf16.mxu0 0
    %1074 = vmatpush1.bf16.msra.mxu0 0
    %1075 = vmatprep.subr.bf16.mxu0 0
    %1076 = vmatpush1.bf16.msra.mxu0 0
    %1077 = vmatprep.subr.bf16.mxu0 0
    %1078 = vmatpush1.bf16.msra.mxu0 0
    %1079 = vmatprep.subr.bf16.mxu0 0
    %1080 = vmatpush1.bf16.msra.mxu0 0
    %1081 = vmatprep.subr.bf16.mxu0 0
    %1082 = vmatpush1.bf16.msra.mxu0 0
    %1083 = vmatprep.subr.bf16.mxu0 0
    %1084 = vmatpush1.bf16.msra.mxu0 0
    %1085 = vmatprep.subr.bf16.mxu0 0
    %1086 = vmatpush1.bf16.msra.mxu0 0
    %1087 = vmatprep.subr.bf16.mxu0 0
    %1088 = vmatpush1.bf16.msra.mxu0 0
    %1089 = vmatprep.mubr.bf16.mxu0 0
    %1090 = vmatmul.mubr.bf16.gmra.mrb[0].mxu0 %v1056
    %v1091 = vpop.f32.mrb[0].mxu0
    %v1092 = vadd.f32 0.0, %v1091
    %v1093 = vpop.f32.mrb[0].mxu0
    %v1094 = vadd.f32 0.0, %v1093
    %v1095 = vpop.f32.mrb[0].mxu0
    %v1096 = vadd.f32 0.0, %v1095
    %v1097 = vpop.f32.mrb[0].mxu0
    %v1098 = vadd.f32 0.0, %v1097
    %1099 = vdwg.mxu0
    %1100 = vmatprep.subr.bf16.mxu0 0
    %1101 = vmatpush1.bf16.msra.mxu0 %v703
    %1102 = vmatprep.subr.bf16.mxu0 0
    %1103 = vmatpush1.bf16.msra.mxu0 %v706
    %1104 = vmatprep.subr.bf16.mxu0 0
    %1105 = vmatpush1.bf16.msra.mxu0 %v709
    %1106 = vmatprep.subr.bf16.mxu0 0
    %1107 = vmatpush1.bf16.msra.mxu0 %v712
    %1108 = vmatprep.subr.bf16.mxu0 0
    %1109 = vmatpush1.bf16.msra.mxu0 %v715
    %1110 = vmatprep.subr.bf16.mxu0 0
    %1111 = vmatpush1.bf16.msra.mxu0 %v718
    %1112 = vmatprep.subr.bf16.mxu0 0
    %1113 = vmatpush1.bf16.msra.mxu0 %v721
    %1114 = vmatprep.subr.bf16.mxu0 0
    %1115 = vmatpush1.bf16.msra.mxu0 %v724
    %1116 = vmatprep.subr.bf16.mxu0 0
    %1117 = vmatpush1.bf16.msra.mxu0 0
    %1118 = vmatprep.subr.bf16.mxu0 0
    %1119 = vmatpush1.bf16.msra.mxu0 0
    %1120 = vmatprep.subr.bf16.mxu0 0
    %1121 = vmatpush1.bf16.msra.mxu0 0
    %1122 = vmatprep.subr.bf16.mxu0 0
    %1123 = vmatpush1.bf16.msra.mxu0 0
    %1124 = vmatprep.subr.bf16.mxu0 0
    %1125 = vmatpush1.bf16.msra.mxu0 0
    %1126 = vmatprep.subr.bf16.mxu0 0
    %1127 = vmatpush1.bf16.msra.mxu0 0
    %1128 = vmatprep.subr.bf16.mxu0 0
    %1129 = vmatpush1.bf16.msra.mxu0 0
    %1130 = vmatprep.subr.bf16.mxu0 0
    %1131 = vmatpush1.bf16.msra.mxu0 0
    %1132 = vmatprep.mubr.bf16.mxu0 0
    %1133 = vmatmul.mubr.bf16.gmra.mrb[0].mxu0 %v1056
    %v1134 = vpop.f32.mrb[0].mxu0
    %v1135 = vadd.f32 0.0, %v1134
    %v1136 = vpop.f32.mrb[0].mxu0
    %v1137 = vpop.f32.mrb[0].mxu0
    %v1138 = vadd.f32 0.0, %v1137
    %v1139 = vpop.f32.mrb[0].mxu0
    %1140 = vdwg.mxu0
    %v1141 = vadd.f32 %v1050, %v1092
    %v1142 = vadd.f32 %v1053, %v1096
    %v1143 = vxor.u32 %v1141, 2147483648
    %v1144 = vxor.u32 %v1142, 2147483648
    %v1145 = vmul.f32 %v1143, 1.442695
    %v1146 = vpow.pop %v1145
    %v1147 = vmul.f32 %v1144, 1.442695
    %v1148 = vpow.pop %v1147
    %v1149 = vadd.f32 %v1146, 1.0
    %v1150 = vadd.f32 %v1148, 1.0
    %v1151 = vrcp.pop %v1149
    %v1152 = vmul.f32 1.0, %v1151
    %v1153 = vrcp.pop %v1150
    %v1154 = vmul.f32 1.0, %v1153
    %v1155 = vadd.f32 %v1051, %v1094
    %v1156 = vadd.f32 %v1054, %v1098
    %v1157 = vxor.u32 %v1155, 2147483648
    %v1158 = vxor.u32 %v1156, 2147483648
    %v1159 = vmul.f32 %v1157, 1.442695
    %v1160 = vpow.pop %v1159
    %v1161 = vmul.f32 %v1158, 1.442695
    %v1162 = vpow.pop %v1161
    %v1163 = vadd.f32 %v1160, 1.0
    %v1164 = vadd.f32 %v1162, 1.0
    %v1165 = vrcp.pop %v1163
    %v1166 = vmul.f32 1.0, %v1165
    %v1167 = vrcp.pop %v1164
    %v1168 = vmul.f32 1.0, %v1167
    %v1169 = vadd.f32 %v1135, %v608
    %v1170 = vadd.f32 %v1138, %v608
    %v1171 = vmul.f32 %v1152, %v1169
    %v1172 = vmul.f32 %v1154, %v1170
    %v1173 = vadd.f32 %v1052, %v1171
    %v1174 = vadd.f32 %v1055, %v1172
    %v1175 = vtanh.pop %v1173
    %v1176 = vtanh.pop %v1174
    %v1177 = vsub.f32 1.0, %v1166
    %v1178 = vsub.f32 1.0, %v1168
    %v1179 = vmul.f32 %v1177, %v1175
    %v1180 = vmul.f32 %v1178, %v1176
    %v1181 = vmul.f32 %v1166, %v1045
    %v1182 = vmul.f32 %v1168, %v1046
    %v1183 = vadd.f32 %v1179, %v1181
    %v1184 = vadd.f32 %v1180, %v1182
    %vm1185 = vcmp.gt.s32.totalorder %v610, 2
    %vm1186 = vcmp.gt.s32.totalorder %v611, 2
    %v1187 = vsel %vm1185, 1, 0
    %v1188 = vsel %vm1186, 1, 0
    %1189 = vset.pattern.permute.xlu0 0
    %1190 = vperm.xlu0 %1189, %v1187
    %v1191 = vpop.permute.xlu0 %1190
    %1192 = vset.pattern.permute.xlu0 0
    %1193 = vperm.xlu0 %1192, %v1188
    %v1194 = vpop.permute.xlu0 %1193
    %vm1195 = vcmp.eq.s32.totalorder %v1191, 1
    %vm1196 = vcmp.eq.s32.totalorder %v1194, 1
    %v1197 = vsel %vm1195, %v1183, 0.0
    %v1198 = vsel %vm1196, %v1184, 0.0
    %v1199 = vsel %vm1195, %v1183, %v1045
    %v1200 = vsel %vm1196, %v1184, %v1046
    %v1201 = vadd.f32 %v1047, %v1197
    %v1202 = vadd.f32 %v1048, %v1198
    %s1203 = scalar_lea.vmem [#allocation2], 144
    %v1204 = vld [vmem:[%s1203] sm:$0xff]
    %v1205 = vld [vmem:[%s1203 + $0x8] sm:$0xff]
    %v1206 = vld [vmem:[%s1203 + $0x10] sm:$0xff]
    %v1207 = vld [vmem:[%s1203 + $0x18] sm:$0xff]
    %v1208 = vld [vmem:[%s1203 + $0x20] sm:$0xff]
    %v1209 = vld [vmem:[%s1203 + $0x28] sm:$0xff]
    %v1210 = vpack.c.bf16 %v1200, %v1199
    %1211 = vmatprep.subr.bf16.mxu0 %v702
    %1212 = vmatpush1.bf16.msra.mxu0 %v701
    %1213 = vmatprep.subr.bf16.mxu0 %v705
    %1214 = vmatpush1.bf16.msra.mxu0 %v704
    %1215 = vmatprep.subr.bf16.mxu0 %v708
    %1216 = vmatpush1.bf16.msra.mxu0 %v707
    %1217 = vmatprep.subr.bf16.mxu0 %v711
    %1218 = vmatpush1.bf16.msra.mxu0 %v710
    %1219 = vmatprep.subr.bf16.mxu0 %v714
    %1220 = vmatpush1.bf16.msra.mxu0 %v713
    %1221 = vmatprep.subr.bf16.mxu0 %v717
    %1222 = vmatpush1.bf16.msra.mxu0 %v716
    %1223 = vmatprep.subr.bf16.mxu0 %v720
    %1224 = vmatpush1.bf16.msra.mxu0 %v719
    %1225 = vmatprep.subr.bf16.mxu0 %v723
    %1226 = vmatpush1.bf16.msra.mxu0 %v722
    %1227 = vmatprep.subr.bf16.mxu0 0
    %1228 = vmatpush1.bf16.msra.mxu0 0
    %1229 = vmatprep.subr.bf16.mxu0 0
    %1230 = vmatpush1.bf16.msra.mxu0 0
    %1231 = vmatprep.subr.bf16.mxu0 0
    %1232 = vmatpush1.bf16.msra.mxu0 0
    %1233 = vmatprep.subr.bf16.mxu0 0
    %1234 = vmatpush1.bf16.msra.mxu0 0
    %1235 = vmatprep.subr.bf16.mxu0 0
    %1236 = vmatpush1.bf16.msra.mxu0 0
    %1237 = vmatprep.subr.bf16.mxu0 0
    %1238 = vmatpush1.bf16.msra.mxu0 0
    %1239 = vmatprep.subr.bf16.mxu0 0
    %1240 = vmatpush1.bf16.msra.mxu0 0
    %1241 = vmatprep.subr.bf16.mxu0 0
    %1242 = vmatpush1.bf16.msra.mxu0 0
    %1243 = vmatprep.mubr.bf16.mxu0 0
    %1244 = vmatmul.mubr.bf16.gmra.mrb[0].mxu0 %v1210
    %v1245 = vpop.f32.mrb[0].mxu0
    %v1246 = vadd.f32 0.0, %v1245
    %v1247 = vpop.f32.mrb[0].mxu0
    %v1248 = vadd.f32 0.0, %v1247
    %v1249 = vpop.f32.mrb[0].mxu0
    %v1250 = vadd.f32 0.0, %v1249
    %v1251 = vpop.f32.mrb[0].mxu0
    %v1252 = vadd.f32 0.0, %v1251
    %1253 = vdwg.mxu0
    %1254 = vmatprep.subr.bf16.mxu0 0
    %1255 = vmatpush1.bf16.msra.mxu0 %v703
    %1256 = vmatprep.subr.bf16.mxu0 0
    %1257 = vmatpush1.bf16.msra.mxu0 %v706
    %1258 = vmatprep.subr.bf16.mxu0 0
    %1259 = vmatpush1.bf16.msra.mxu0 %v709
    %1260 = vmatprep.subr.bf16.mxu0 0
    %1261 = vmatpush1.bf16.msra.mxu0 %v712
    %1262 = vmatprep.subr.bf16.mxu0 0
    %1263 = vmatpush1.bf16.msra.mxu0 %v715
    %1264 = vmatprep.subr.bf16.mxu0 0
    %1265 = vmatpush1.bf16.msra.mxu0 %v718
    %1266 = vmatprep.subr.bf16.mxu0 0
    %1267 = vmatpush1.bf16.msra.mxu0 %v721
    %1268 = vmatprep.subr.bf16.mxu0 0
    %1269 = vmatpush1.bf16.msra.mxu0 %v724
    %1270 = vmatprep.subr.bf16.mxu0 0
    %1271 = vmatpush1.bf16.msra.mxu0 0
    %1272 = vmatprep.subr.bf16.mxu0 0
    %1273 = vmatpush1.bf16.msra.mxu0 0
    %1274 = vmatprep.subr.bf16.mxu0 0
    %1275 = vmatpush1.bf16.msra.mxu0 0
    %1276 = vmatprep.subr.bf16.mxu0 0
    %1277 = vmatpush1.bf16.msra.mxu0 0
    %1278 = vmatprep.subr.bf16.mxu0 0
    %1279 = vmatpush1.bf16.msra.mxu0 0
    %1280 = vmatprep.subr.bf16.mxu0 0
    %1281 = vmatpush1.bf16.msra.mxu0 0
    %1282 = vmatprep.subr.bf16.mxu0 0
    %1283 = vmatpush1.bf16.msra.mxu0 0
    %1284 = vmatprep.subr.bf16.mxu0 0
    %1285 = vmatpush1.bf16.msra.mxu0 0
    %1286 = vmatprep.mubr.bf16.mxu0 0
    %1287 = vmatmul.mubr.bf16.gmra.mrb[0].mxu0 %v1210
    %v1288 = vpop.f32.mrb[0].mxu0
    %v1289 = vadd.f32 0.0, %v1288
    %v1290 = vpop.f32.mrb[0].mxu0
    %v1291 = vpop.f32.mrb[0].mxu0
    %v1292 = vadd.f32 0.0, %v1291
    %v1293 = vpop.f32.mrb[0].mxu0
    %1294 = vdwg.mxu0
    %v1295 = vadd.f32 %v1204, %v1246
    %v1296 = vadd.f32 %v1207, %v1250
    %v1297 = vxor.u32 %v1295, 2147483648
    %v1298 = vxor.u32 %v1296, 2147483648
    %v1299 = vmul.f32 %v1297, 1.442695
    %v1300 = vpow.pop %v1299
    %v1301 = vmul.f32 %v1298, 1.442695
    %v1302 = vpow.pop %v1301
    %v1303 = vadd.f32 %v1300, 1.0
    %v1304 = vadd.f32 %v1302, 1.0
    %v1305 = vrcp.pop %v1303
    %v1306 = vmul.f32 1.0, %v1305
    %v1307 = vrcp.pop %v1304
    %v1308 = vmul.f32 1.0, %v1307
    %v1309 = vadd.f32 %v1205, %v1248
    %v1310 = vadd.f32 %v1208, %v1252
    %v1311 = vxor.u32 %v1309, 2147483648
    %v1312 = vxor.u32 %v1310, 2147483648
    %v1313 = vmul.f32 %v1311, 1.442695
    %v1314 = vpow.pop %v1313
    %v1315 = vmul.f32 %v1312, 1.442695
    %v1316 = vpow.pop %v1315
    %v1317 = vadd.f32 %v1314, 1.0
    %v1318 = vadd.f32 %v1316, 1.0
    %v1319 = vrcp.pop %v1317
    %v1320 = vmul.f32 1.0, %v1319
    %v1321 = vrcp.pop %v1318
    %v1322 = vmul.f32 1.0, %v1321
    %v1323 = vadd.f32 %v1289, %v608
    %v1324 = vadd.f32 %v1292, %v608
    %v1325 = vmul.f32 %v1306, %v1323
    %v1326 = vmul.f32 %v1308, %v1324
    %v1327 = vadd.f32 %v1206, %v1325
    %v1328 = vadd.f32 %v1209, %v1326
    %v1329 = vtanh.pop %v1327
    %v1330 = vtanh.pop %v1328
    %v1331 = vsub.f32 1.0, %v1320
    %v1332 = vsub.f32 1.0, %v1322
    %v1333 = vmul.f32 %v1331, %v1329
    %v1334 = vmul.f32 %v1332, %v1330
    %v1335 = vmul.f32 %v1320, %v1199
    %v1336 = vmul.f32 %v1322, %v1200
    %v1337 = vadd.f32 %v1333, %v1335
    %v1338 = vadd.f32 %v1334, %v1336
    %vm1339 = vcmp.gt.s32.totalorder %v610, 3
    %vm1340 = vcmp.gt.s32.totalorder %v611, 3
    %v1341 = vsel %vm1339, 1, 0
    %v1342 = vsel %vm1340, 1, 0
    %1343 = vset.pattern.permute.xlu0 0
    %1344 = vperm.xlu0 %1343, %v1341
    %v1345 = vpop.permute.xlu0 %1344
    %1346 = vset.pattern.permute.xlu0 0
    %1347 = vperm.xlu0 %1346, %v1342
    %v1348 = vpop.permute.xlu0 %1347
    %vm1349 = vcmp.eq.s32.totalorder %v1345, 1
    %vm1350 = vcmp.eq.s32.totalorder %v1348, 1
    %v1351 = vsel %vm1349, %v1337, 0.0
    %v1352 = vsel %vm1350, %v1338, 0.0
    %v1353 = vsel %vm1349, %v1337, %v1199
    %v1354 = vsel %vm1350, %v1338, %v1200
    %v1355 = vadd.f32 %v1201, %v1351
    %v1356 = vadd.f32 %v1202, %v1352
    %s1357 = scalar_lea.vmem [#allocation2], 192
    %v1358 = vld [vmem:[%s1357] sm:$0xff]
    %v1359 = vld [vmem:[%s1357 + $0x8] sm:$0xff]
    %v1360 = vld [vmem:[%s1357 + $0x10] sm:$0xff]
    %v1361 = vld [vmem:[%s1357 + $0x18] sm:$0xff]
    %v1362 = vld [vmem:[%s1357 + $0x20] sm:$0xff]
    %v1363 = vld [vmem:[%s1357 + $0x28] sm:$0xff]
    %v1364 = vpack.c.bf16 %v1354, %v1353
    %1365 = vmatprep.subr.bf16.mxu0 %v702
    %1366 = vmatpush1.bf16.msra.mxu0 %v701
    %1367 = vmatprep.subr.bf16.mxu0 %v705
    %1368 = vmatpush1.bf16.msra.mxu0 %v704
    %1369 = vmatprep.subr.bf16.mxu0 %v708
    %1370 = vmatpush1.bf16.msra.mxu0 %v707
    %1371 = vmatprep.subr.bf16.mxu0 %v711
    %1372 = vmatpush1.bf16.msra.mxu0 %v710
    %1373 = vmatprep.subr.bf16.mxu0 %v714
    %1374 = vmatpush1.bf16.msra.mxu0 %v713
    %1375 = vmatprep.subr.bf16.mxu0 %v717
    %1376 = vmatpush1.bf16.msra.mxu0 %v716
    %1377 = vmatprep.subr.bf16.mxu0 %v720
    %1378 = vmatpush1.bf16.msra.mxu0 %v719
    %1379 = vmatprep.subr.bf16.mxu0 %v723
    %1380 = vmatpush1.bf16.msra.mxu0 %v722
    %1381 = vmatprep.subr.bf16.mxu0 0
    %1382 = vmatpush1.bf16.msra.mxu0 0
    %1383 = vmatprep.subr.bf16.mxu0 0
    %1384 = vmatpush1.bf16.msra.mxu0 0
    %1385 = vmatprep.subr.bf16.mxu0 0
    %1386 = vmatpush1.bf16.msra.mxu0 0
    %1387 = vmatprep.subr.bf16.mxu0 0
    %1388 = vmatpush1.bf16.msra.mxu0 0
    %1389 = vmatprep.subr.bf16.mxu0 0
    %1390 = vmatpush1.bf16.msra.mxu0 0
    %1391 = vmatprep.subr.bf16.mxu0 0
    %1392 = vmatpush1.bf16.msra.mxu0 0
    %1393 = vmatprep.subr.bf16.mxu0 0
    %1394 = vmatpush1.bf16.msra.mxu0 0
    %1395 = vmatprep.subr.bf16.mxu0 0
    %1396 = vmatpush1.bf16.msra.mxu0 0
    %1397 = vmatprep.mubr.bf16.mxu0 0
    %1398 = vmatmul.mubr.bf16.gmra.mrb[0].mxu0 %v1364
    %v1399 = vpop.f32.mrb[0].mxu0
    %v1400 = vadd.f32 0.0, %v1399
    %v1401 = vpop.f32.mrb[0].mxu0
    %v1402 = vadd.f32 0.0, %v1401
    %v1403 = vpop.f32.mrb[0].mxu0
    %v1404 = vadd.f32 0.0, %v1403
    %v1405 = vpop.f32.mrb[0].mxu0
    %v1406 = vadd.f32 0.0, %v1405
    %1407 = vdwg.mxu0
    %1408 = vmatprep.subr.bf16.mxu0 0
    %1409 = vmatpush1.bf16.msra.mxu0 %v703
    %1410 = vmatprep.subr.bf16.mxu0 0
    %1411 = vmatpush1.bf16.msra.mxu0 %v706
    %1412 = vmatprep.subr.bf16.mxu0 0
    %1413 = vmatpush1.bf16.msra.mxu0 %v709
    %1414 = vmatprep.subr.bf16.mxu0 0
    %1415 = vmatpush1.bf16.msra.mxu0 %v712
    %1416 = vmatprep.subr.bf16.mxu0 0
    %1417 = vmatpush1.bf16.msra.mxu0 %v715
    %1418 = vmatprep.subr.bf16.mxu0 0
    %1419 = vmatpush1.bf16.msra.mxu0 %v718
    %1420 = vmatprep.subr.bf16.mxu0 0
    %1421 = vmatpush1.bf16.msra.mxu0 %v721
    %1422 = vmatprep.subr.bf16.mxu0 0
    %1423 = vmatpush1.bf16.msra.mxu0 %v724
    %1424 = vmatprep.subr.bf16.mxu0 0
    %1425 = vmatpush1.bf16.msra.mxu0 0
    %1426 = vmatprep.subr.bf16.mxu0 0
    %1427 = vmatpush1.bf16.msra.mxu0 0
    %1428 = vmatprep.subr.bf16.mxu0 0
    %1429 = vmatpush1.bf16.msra.mxu0 0
    %1430 = vmatprep.subr.bf16.mxu0 0
    %1431 = vmatpush1.bf16.msra.mxu0 0
    %1432 = vmatprep.subr.bf16.mxu0 0
    %1433 = vmatpush1.bf16.msra.mxu0 0
    %1434 = vmatprep.subr.bf16.mxu0 0
    %1435 = vmatpush1.bf16.msra.mxu0 0
    %1436 = vmatprep.subr.bf16.mxu0 0
    %1437 = vmatpush1.bf16.msra.mxu0 0
    %1438 = vmatprep.subr.bf16.mxu0 0
    %1439 = vmatpush1.bf16.msra.mxu0 0
    %1440 = vmatprep.mubr.bf16.mxu0 0
    %1441 = vmatmul.mubr.bf16.gmra.mrb[0].mxu0 %v1364
    %v1442 = vpop.f32.mrb[0].mxu0
    %v1443 = vadd.f32 0.0, %v1442
    %v1444 = vpop.f32.mrb[0].mxu0
    %v1445 = vpop.f32.mrb[0].mxu0
    %v1446 = vadd.f32 0.0, %v1445
    %v1447 = vpop.f32.mrb[0].mxu0
    %1448 = vdwg.mxu0
    %v1449 = vadd.f32 %v1358, %v1400
    %v1450 = vadd.f32 %v1361, %v1404
    %v1451 = vxor.u32 %v1449, 2147483648
    %v1452 = vxor.u32 %v1450, 2147483648
    %v1453 = vmul.f32 %v1451, 1.442695
    %v1454 = vpow.pop %v1453
    %v1455 = vmul.f32 %v1452, 1.442695
    %v1456 = vpow.pop %v1455
    %v1457 = vadd.f32 %v1454, 1.0
    %v1458 = vadd.f32 %v1456, 1.0
    %v1459 = vrcp.pop %v1457
    %v1460 = vmul.f32 1.0, %v1459
    %v1461 = vrcp.pop %v1458
    %v1462 = vmul.f32 1.0, %v1461
    %v1463 = vadd.f32 %v1359, %v1402
    %v1464 = vadd.f32 %v1362, %v1406
    %v1465 = vxor.u32 %v1463, 2147483648
    %v1466 = vxor.u32 %v1464, 2147483648
    %v1467 = vmul.f32 %v1465, 1.442695
    %v1468 = vpow.pop %v1467
    %v1469 = vmul.f32 %v1466, 1.442695
    %v1470 = vpow.pop %v1469
    %v1471 = vadd.f32 %v1468, 1.0
    %v1472 = vadd.f32 %v1470, 1.0
    %v1473 = vrcp.pop %v1471
    %v1474 = vmul.f32 1.0, %v1473
    %v1475 = vrcp.pop %v1472
    %v1476 = vmul.f32 1.0, %v1475
    %v1477 = vadd.f32 %v1443, %v608
    %v1478 = vadd.f32 %v1446, %v608
    %v1479 = vmul.f32 %v1460, %v1477
    %v1480 = vmul.f32 %v1462, %v1478
    %v1481 = vadd.f32 %v1360, %v1479
    %v1482 = vadd.f32 %v1363, %v1480
    %v1483 = vtanh.pop %v1481
    %v1484 = vtanh.pop %v1482
    %v1485 = vsub.f32 1.0, %v1474
    %v1486 = vsub.f32 1.0, %v1476
    %v1487 = vmul.f32 %v1485, %v1483
    %v1488 = vmul.f32 %v1486, %v1484
    %v1489 = vmul.f32 %v1474, %v1353
    %v1490 = vmul.f32 %v1476, %v1354
    %v1491 = vadd.f32 %v1487, %v1489
    %v1492 = vadd.f32 %v1488, %v1490
    %vm1493 = vcmp.gt.s32.totalorder %v610, 4
    %vm1494 = vcmp.gt.s32.totalorder %v611, 4
    %v1495 = vsel %vm1493, 1, 0
    %v1496 = vsel %vm1494, 1, 0
    %1497 = vset.pattern.permute.xlu0 0
    %1498 = vperm.xlu0 %1497, %v1495
    %v1499 = vpop.permute.xlu0 %1498
    %1500 = vset.pattern.permute.xlu0 0
    %1501 = vperm.xlu0 %1500, %v1496
    %v1502 = vpop.permute.xlu0 %1501
    %vm1503 = vcmp.eq.s32.totalorder %v1499, 1
    %vm1504 = vcmp.eq.s32.totalorder %v1502, 1
    %v1505 = vsel %vm1503, %v1491, 0.0
    %v1506 = vsel %vm1504, %v1492, 0.0
    %v1507 = vsel %vm1503, %v1491, %v1353
    %v1508 = vsel %vm1504, %v1492, %v1354
    %v1509 = vadd.f32 %v1355, %v1505
    %v1510 = vadd.f32 %v1356, %v1506
    %s1511 = scalar_lea.vmem [#allocation2], 240
    %v1512 = vld [vmem:[%s1511] sm:$0xff]
    %v1513 = vld [vmem:[%s1511 + $0x8] sm:$0xff]
    %v1514 = vld [vmem:[%s1511 + $0x10] sm:$0xff]
    %v1515 = vld [vmem:[%s1511 + $0x18] sm:$0xff]
    %v1516 = vld [vmem:[%s1511 + $0x20] sm:$0xff]
    %v1517 = vld [vmem:[%s1511 + $0x28] sm:$0xff]
    %v1518 = vpack.c.bf16 %v1508, %v1507
    %1519 = vmatprep.subr.bf16.mxu0 %v702
    %1520 = vmatpush1.bf16.msra.mxu0 %v701
    %1521 = vmatprep.subr.bf16.mxu0 %v705
    %1522 = vmatpush1.bf16.msra.mxu0 %v704
    %1523 = vmatprep.subr.bf16.mxu0 %v708
    %1524 = vmatpush1.bf16.msra.mxu0 %v707
    %1525 = vmatprep.subr.bf16.mxu0 %v711
    %1526 = vmatpush1.bf16.msra.mxu0 %v710
    %1527 = vmatprep.subr.bf16.mxu0 %v714
    %1528 = vmatpush1.bf16.msra.mxu0 %v713
    %1529 = vmatprep.subr.bf16.mxu0 %v717
    %1530 = vmatpush1.bf16.msra.mxu0 %v716
    %1531 = vmatprep.subr.bf16.mxu0 %v720
    %1532 = vmatpush1.bf16.msra.mxu0 %v719
    %1533 = vmatprep.subr.bf16.mxu0 %v723
    %1534 = vmatpush1.bf16.msra.mxu0 %v722
    %1535 = vmatprep.subr.bf16.mxu0 0
    %1536 = vmatpush1.bf16.msra.mxu0 0
    %1537 = vmatprep.subr.bf16.mxu0 0
    %1538 = vmatpush1.bf16.msra.mxu0 0
    %1539 = vmatprep.subr.bf16.mxu0 0
    %1540 = vmatpush1.bf16.msra.mxu0 0
    %1541 = vmatprep.subr.bf16.mxu0 0
    %1542 = vmatpush1.bf16.msra.mxu0 0
    %1543 = vmatprep.subr.bf16.mxu0 0
    %1544 = vmatpush1.bf16.msra.mxu0 0
    %1545 = vmatprep.subr.bf16.mxu0 0
    %1546 = vmatpush1.bf16.msra.mxu0 0
    %1547 = vmatprep.subr.bf16.mxu0 0
    %1548 = vmatpush1.bf16.msra.mxu0 0
    %1549 = vmatprep.subr.bf16.mxu0 0
    %1550 = vmatpush1.bf16.msra.mxu0 0
    %1551 = vmatprep.mubr.bf16.mxu0 0
    %1552 = vmatmul.mubr.bf16.gmra.mrb[0].mxu0 %v1518
    %v1553 = vpop.f32.mrb[0].mxu0
    %v1554 = vadd.f32 0.0, %v1553
    %v1555 = vpop.f32.mrb[0].mxu0
    %v1556 = vadd.f32 0.0, %v1555
    %v1557 = vpop.f32.mrb[0].mxu0
    %v1558 = vadd.f32 0.0, %v1557
    %v1559 = vpop.f32.mrb[0].mxu0
    %v1560 = vadd.f32 0.0, %v1559
    %1561 = vdwg.mxu0
    %1562 = vmatprep.subr.bf16.mxu0 0
    %1563 = vmatpush1.bf16.msra.mxu0 %v703
    %1564 = vmatprep.subr.bf16.mxu0 0
    %1565 = vmatpush1.bf16.msra.mxu0 %v706
    %1566 = vmatprep.subr.bf16.mxu0 0
    %1567 = vmatpush1.bf16.msra.mxu0 %v709
    %1568 = vmatprep.subr.bf16.mxu0 0
    %1569 = vmatpush1.bf16.msra.mxu0 %v712
    %1570 = vmatprep.subr.bf16.mxu0 0
    %1571 = vmatpush1.bf16.msra.mxu0 %v715
    %1572 = vmatprep.subr.bf16.mxu0 0
    %1573 = vmatpush1.bf16.msra.mxu0 %v718
    %1574 = vmatprep.subr.bf16.mxu0 0
    %1575 = vmatpush1.bf16.msra.mxu0 %v721
    %1576 = vmatprep.subr.bf16.mxu0 0
    %1577 = vmatpush1.bf16.msra.mxu0 %v724
    %1578 = vmatprep.subr.bf16.mxu0 0
    %1579 = vmatpush1.bf16.msra.mxu0 0
    %1580 = vmatprep.subr.bf16.mxu0 0
    %1581 = vmatpush1.bf16.msra.mxu0 0
    %1582 = vmatprep.subr.bf16.mxu0 0
    %1583 = vmatpush1.bf16.msra.mxu0 0
    %1584 = vmatprep.subr.bf16.mxu0 0
    %1585 = vmatpush1.bf16.msra.mxu0 0
    %1586 = vmatprep.subr.bf16.mxu0 0
    %1587 = vmatpush1.bf16.msra.mxu0 0
    %1588 = vmatprep.subr.bf16.mxu0 0
    %1589 = vmatpush1.bf16.msra.mxu0 0
    %1590 = vmatprep.subr.bf16.mxu0 0
    %1591 = vmatpush1.bf16.msra.mxu0 0
    %1592 = vmatprep.subr.bf16.mxu0 0
    %1593 = vmatpush1.bf16.msra.mxu0 0
    %1594 = vmatprep.mubr.bf16.mxu0 0
    %1595 = vmatmul.mubr.bf16.gmra.mrb[0].mxu0 %v1518
    %v1596 = vpop.f32.mrb[0].mxu0
    %v1597 = vadd.f32 0.0, %v1596
    %v1598 = vpop.f32.mrb[0].mxu0
    %v1599 = vpop.f32.mrb[0].mxu0
    %v1600 = vadd.f32 0.0, %v1599
    %v1601 = vpop.f32.mrb[0].mxu0
    %1602 = vdwg.mxu0
    %v1603 = vadd.f32 %v1512, %v1554
    %v1604 = vadd.f32 %v1515, %v1558
    %v1605 = vxor.u32 %v1603, 2147483648
    %v1606 = vxor.u32 %v1604, 2147483648
    %v1607 = vmul.f32 %v1605, 1.442695
    %v1608 = vpow.pop %v1607
    %v1609 = vmul.f32 %v1606, 1.442695
    %v1610 = vpow.pop %v1609
    %v1611 = vadd.f32 %v1608, 1.0
    %v1612 = vadd.f32 %v1610, 1.0
    %v1613 = vrcp.pop %v1611
    %v1614 = vmul.f32 1.0, %v1613
    %v1615 = vrcp.pop %v1612
    %v1616 = vmul.f32 1.0, %v1615
    %v1617 = vadd.f32 %v1513, %v1556
    %v1618 = vadd.f32 %v1516, %v1560
    %v1619 = vxor.u32 %v1617, 2147483648
    %v1620 = vxor.u32 %v1618, 2147483648
    %v1621 = vmul.f32 %v1619, 1.442695
    %v1622 = vpow.pop %v1621
    %v1623 = vmul.f32 %v1620, 1.442695
    %v1624 = vpow.pop %v1623
    %v1625 = vadd.f32 %v1622, 1.0
    %v1626 = vadd.f32 %v1624, 1.0
    %v1627 = vrcp.pop %v1625
    %v1628 = vmul.f32 1.0, %v1627
    %v1629 = vrcp.pop %v1626
    %v1630 = vmul.f32 1.0, %v1629
    %v1631 = vadd.f32 %v1597, %v608
    %v1632 = vadd.f32 %v1600, %v608
    %v1633 = vmul.f32 %v1614, %v1631
    %v1634 = vmul.f32 %v1616, %v1632
    %v1635 = vadd.f32 %v1514, %v1633
    %v1636 = vadd.f32 %v1517, %v1634
    %v1637 = vtanh.pop %v1635
    %v1638 = vtanh.pop %v1636
    %v1639 = vsub.f32 1.0, %v1628
    %v1640 = vsub.f32 1.0, %v1630
    %v1641 = vmul.f32 %v1639, %v1637
    %v1642 = vmul.f32 %v1640, %v1638
    %v1643 = vmul.f32 %v1628, %v1507
    %v1644 = vmul.f32 %v1630, %v1508
    %v1645 = vadd.f32 %v1641, %v1643
    %v1646 = vadd.f32 %v1642, %v1644
    %vm1647 = vcmp.gt.s32.totalorder %v610, 5
    %vm1648 = vcmp.gt.s32.totalorder %v611, 5
    %v1649 = vsel %vm1647, 1, 0
    %v1650 = vsel %vm1648, 1, 0
    %1651 = vset.pattern.permute.xlu0 0
    %1652 = vperm.xlu0 %1651, %v1649
    %v1653 = vpop.permute.xlu0 %1652
    %1654 = vset.pattern.permute.xlu0 0
    %1655 = vperm.xlu0 %1654, %v1650
    %v1656 = vpop.permute.xlu0 %1655
    %vm1657 = vcmp.eq.s32.totalorder %v1653, 1
    %vm1658 = vcmp.eq.s32.totalorder %v1656, 1
    %v1659 = vsel %vm1657, %v1645, 0.0
    %v1660 = vsel %vm1658, %v1646, 0.0
    %v1661 = vsel %vm1657, %v1645, %v1507
    %v1662 = vsel %vm1658, %v1646, %v1508
    %v1663 = vadd.f32 %v1509, %v1659
    %v1664 = vadd.f32 %v1510, %v1660
    %s1665 = scalar_lea.vmem [#allocation2], 288
    %v1666 = vld [vmem:[%s1665] sm:$0xff]
    %v1667 = vld [vmem:[%s1665 + $0x8] sm:$0xff]
    %v1668 = vld [vmem:[%s1665 + $0x10] sm:$0xff]
    %v1669 = vld [vmem:[%s1665 + $0x18] sm:$0xff]
    %v1670 = vld [vmem:[%s1665 + $0x20] sm:$0xff]
    %v1671 = vld [vmem:[%s1665 + $0x28] sm:$0xff]
    %v1672 = vpack.c.bf16 %v1662, %v1661
    %1673 = vmatprep.subr.bf16.mxu0 %v702
    %1674 = vmatpush1.bf16.msra.mxu0 %v701
    %1675 = vmatprep.subr.bf16.mxu0 %v705
    %1676 = vmatpush1.bf16.msra.mxu0 %v704
    %1677 = vmatprep.subr.bf16.mxu0 %v708
    %1678 = vmatpush1.bf16.msra.mxu0 %v707
    %1679 = vmatprep.subr.bf16.mxu0 %v711
    %1680 = vmatpush1.bf16.msra.mxu0 %v710
    %1681 = vmatprep.subr.bf16.mxu0 %v714
    %1682 = vmatpush1.bf16.msra.mxu0 %v713
    %1683 = vmatprep.subr.bf16.mxu0 %v717
    %1684 = vmatpush1.bf16.msra.mxu0 %v716
    %1685 = vmatprep.subr.bf16.mxu0 %v720
    %1686 = vmatpush1.bf16.msra.mxu0 %v719
    %1687 = vmatprep.subr.bf16.mxu0 %v723
    %1688 = vmatpush1.bf16.msra.mxu0 %v722
    %1689 = vmatprep.subr.bf16.mxu0 0
    %1690 = vmatpush1.bf16.msra.mxu0 0
    %1691 = vmatprep.subr.bf16.mxu0 0
    %1692 = vmatpush1.bf16.msra.mxu0 0
    %1693 = vmatprep.subr.bf16.mxu0 0
    %1694 = vmatpush1.bf16.msra.mxu0 0
    %1695 = vmatprep.subr.bf16.mxu0 0
    %1696 = vmatpush1.bf16.msra.mxu0 0
    %1697 = vmatprep.subr.bf16.mxu0 0
    %1698 = vmatpush1.bf16.msra.mxu0 0
    %1699 = vmatprep.subr.bf16.mxu0 0
    %1700 = vmatpush1.bf16.msra.mxu0 0
    %1701 = vmatprep.subr.bf16.mxu0 0
    %1702 = vmatpush1.bf16.msra.mxu0 0
    %1703 = vmatprep.subr.bf16.mxu0 0
    %1704 = vmatpush1.bf16.msra.mxu0 0
    %1705 = vmatprep.mubr.bf16.mxu0 0
    %1706 = vmatmul.mubr.bf16.gmra.mrb[0].mxu0 %v1672
    %v1707 = vpop.f32.mrb[0].mxu0
    %v1708 = vadd.f32 0.0, %v1707
    %v1709 = vpop.f32.mrb[0].mxu0
    %v1710 = vadd.f32 0.0, %v1709
    %v1711 = vpop.f32.mrb[0].mxu0
    %v1712 = vadd.f32 0.0, %v1711
    %v1713 = vpop.f32.mrb[0].mxu0
    %v1714 = vadd.f32 0.0, %v1713
    %1715 = vdwg.mxu0
    %1716 = vmatprep.subr.bf16.mxu0 0
    %1717 = vmatpush1.bf16.msra.mxu0 %v703
    %1718 = vmatprep.subr.bf16.mxu0 0
    %1719 = vmatpush1.bf16.msra.mxu0 %v706
    %1720 = vmatprep.subr.bf16.mxu0 0
    %1721 = vmatpush1.bf16.msra.mxu0 %v709
    %1722 = vmatprep.subr.bf16.mxu0 0
    %1723 = vmatpush1.bf16.msra.mxu0 %v712
    %1724 = vmatprep.subr.bf16.mxu0 0
    %1725 = vmatpush1.bf16.msra.mxu0 %v715
    %1726 = vmatprep.subr.bf16.mxu0 0
    %1727 = vmatpush1.bf16.msra.mxu0 %v718
    %1728 = vmatprep.subr.bf16.mxu0 0
    %1729 = vmatpush1.bf16.msra.mxu0 %v721
    %1730 = vmatprep.subr.bf16.mxu0 0
    %1731 = vmatpush1.bf16.msra.mxu0 %v724
    %1732 = vmatprep.subr.bf16.mxu0 0
    %1733 = vmatpush1.bf16.msra.mxu0 0
    %1734 = vmatprep.subr.bf16.mxu0 0
    %1735 = vmatpush1.bf16.msra.mxu0 0
    %1736 = vmatprep.subr.bf16.mxu0 0
    %1737 = vmatpush1.bf16.msra.mxu0 0
    %1738 = vmatprep.subr.bf16.mxu0 0
    %1739 = vmatpush1.bf16.msra.mxu0 0
    %1740 = vmatprep.subr.bf16.mxu0 0
    %1741 = vmatpush1.bf16.msra.mxu0 0
    %1742 = vmatprep.subr.bf16.mxu0 0
    %1743 = vmatpush1.bf16.msra.mxu0 0
    %1744 = vmatprep.subr.bf16.mxu0 0
    %1745 = vmatpush1.bf16.msra.mxu0 0
    %1746 = vmatprep.subr.bf16.mxu0 0
    %1747 = vmatpush1.bf16.msra.mxu0 0
    %1748 = vmatprep.mubr.bf16.mxu0 0
    %1749 = vmatmul.mubr.bf16.gmra.mrb[0].mxu0 %v1672
    %v1750 = vpop.f32.mrb[0].mxu0
    %v1751 = vadd.f32 0.0, %v1750
    %v1752 = vpop.f32.mrb[0].mxu0
    %v1753 = vpop.f32.mrb[0].mxu0
    %v1754 = vadd.f32 0.0, %v1753
    %v1755 = vpop.f32.mrb[0].mxu0
    %1756 = vdwg.mxu0
    %v1757 = vadd.f32 %v1666, %v1708
    %v1758 = vadd.f32 %v1669, %v1712
    %v1759 = vxor.u32 %v1757, 2147483648
    %v1760 = vxor.u32 %v1758, 2147483648
    %v1761 = vmul.f32 %v1759, 1.442695
    %v1762 = vpow.pop %v1761
    %v1763 = vmul.f32 %v1760, 1.442695
    %v1764 = vpow.pop %v1763
    %v1765 = vadd.f32 %v1762, 1.0
    %v1766 = vadd.f32 %v1764, 1.0
    %v1767 = vrcp.pop %v1765
    %v1768 = vmul.f32 1.0, %v1767
    %v1769 = vrcp.pop %v1766
    %v1770 = vmul.f32 1.0, %v1769
    %v1771 = vadd.f32 %v1667, %v1710
    %v1772 = vadd.f32 %v1670, %v1714
    %v1773 = vxor.u32 %v1771, 2147483648
    %v1774 = vxor.u32 %v1772, 2147483648
    %v1775 = vmul.f32 %v1773, 1.442695
    %v1776 = vpow.pop %v1775
    %v1777 = vmul.f32 %v1774, 1.442695
    %v1778 = vpow.pop %v1777
    %v1779 = vadd.f32 %v1776, 1.0
    %v1780 = vadd.f32 %v1778, 1.0
    %v1781 = vrcp.pop %v1779
    %v1782 = vmul.f32 1.0, %v1781
    %v1783 = vrcp.pop %v1780
    %v1784 = vmul.f32 1.0, %v1783
    %v1785 = vadd.f32 %v1751, %v608
    %v1786 = vadd.f32 %v1754, %v608
    %v1787 = vmul.f32 %v1768, %v1785
    %v1788 = vmul.f32 %v1770, %v1786
    %v1789 = vadd.f32 %v1668, %v1787
    %v1790 = vadd.f32 %v1671, %v1788
    %v1791 = vtanh.pop %v1789
    %v1792 = vtanh.pop %v1790
    %v1793 = vsub.f32 1.0, %v1782
    %v1794 = vsub.f32 1.0, %v1784
    %v1795 = vmul.f32 %v1793, %v1791
    %v1796 = vmul.f32 %v1794, %v1792
    %v1797 = vmul.f32 %v1782, %v1661
    %v1798 = vmul.f32 %v1784, %v1662
    %v1799 = vadd.f32 %v1795, %v1797
    %v1800 = vadd.f32 %v1796, %v1798
    %vm1801 = vcmp.gt.s32.totalorder %v610, 6
    %vm1802 = vcmp.gt.s32.totalorder %v611, 6
    %v1803 = vsel %vm1801, 1, 0
    %v1804 = vsel %vm1802, 1, 0
    %1805 = vset.pattern.permute.xlu0 0
    %1806 = vperm.xlu0 %1805, %v1803
    %v1807 = vpop.permute.xlu0 %1806
    %1808 = vset.pattern.permute.xlu0 0
    %1809 = vperm.xlu0 %1808, %v1804
    %v1810 = vpop.permute.xlu0 %1809
    %vm1811 = vcmp.eq.s32.totalorder %v1807, 1
    %vm1812 = vcmp.eq.s32.totalorder %v1810, 1
    %v1813 = vsel %vm1811, %v1799, 0.0
    %v1814 = vsel %vm1812, %v1800, 0.0
    %v1815 = vsel %vm1811, %v1799, %v1661
    %v1816 = vsel %vm1812, %v1800, %v1662
    %v1817 = vadd.f32 %v1663, %v1813
    %v1818 = vadd.f32 %v1664, %v1814
    %s1819 = scalar_lea.vmem [#allocation2], 336
    %v1820 = vld [vmem:[%s1819] sm:$0xff]
    %v1821 = vld [vmem:[%s1819 + $0x8] sm:$0xff]
    %v1822 = vld [vmem:[%s1819 + $0x10] sm:$0xff]
    %v1823 = vld [vmem:[%s1819 + $0x18] sm:$0xff]
    %v1824 = vld [vmem:[%s1819 + $0x20] sm:$0xff]
    %v1825 = vld [vmem:[%s1819 + $0x28] sm:$0xff]
    %v1826 = vpack.c.bf16 %v1816, %v1815
    %1827 = vmatprep.subr.bf16.mxu0 %v702
    %1828 = vmatpush1.bf16.msra.mxu0 %v701
    %1829 = vmatprep.subr.bf16.mxu0 %v705
    %1830 = vmatpush1.bf16.msra.mxu0 %v704
    %1831 = vmatprep.subr.bf16.mxu0 %v708
    %1832 = vmatpush1.bf16.msra.mxu0 %v707
    %1833 = vmatprep.subr.bf16.mxu0 %v711
    %1834 = vmatpush1.bf16.msra.mxu0 %v710
    %1835 = vmatprep.subr.bf16.mxu0 %v714
    %1836 = vmatpush1.bf16.msra.mxu0 %v713
    %1837 = vmatprep.subr.bf16.mxu0 %v717
    %1838 = vmatpush1.bf16.msra.mxu0 %v716
    %1839 = vmatprep.subr.bf16.mxu0 %v720
    %1840 = vmatpush1.bf16.msra.mxu0 %v719
    %1841 = vmatprep.subr.bf16.mxu0 %v723
    %1842 = vmatpush1.bf16.msra.mxu0 %v722
    %1843 = vmatprep.subr.bf16.mxu0 0
    %1844 = vmatpush1.bf16.msra.mxu0 0
    %1845 = vmatprep.subr.bf16.mxu0 0
    %1846 = vmatpush1.bf16.msra.mxu0 0
    %1847 = vmatprep.subr.bf16.mxu0 0
    %1848 = vmatpush1.bf16.msra.mxu0 0
    %1849 = vmatprep.subr.bf16.mxu0 0
    %1850 = vmatpush1.bf16.msra.mxu0 0
    %1851 = vmatprep.subr.bf16.mxu0 0
    %1852 = vmatpush1.bf16.msra.mxu0 0
    %1853 = vmatprep.subr.bf16.mxu0 0
    %1854 = vmatpush1.bf16.msra.mxu0 0
    %1855 = vmatprep.subr.bf16.mxu0 0
    %1856 = vmatpush1.bf16.msra.mxu0 0
    %1857 = vmatprep.subr.bf16.mxu0 0
    %1858 = vmatpush1.bf16.msra.mxu0 0
    %1859 = vmatprep.mubr.bf16.mxu0 0
    %1860 = vmatmul.mubr.bf16.gmra.mrb[0].mxu0 %v1826
    %v1861 = vpop.f32.mrb[0].mxu0
    %v1862 = vadd.f32 0.0, %v1861
    %v1863 = vpop.f32.mrb[0].mxu0
    %v1864 = vadd.f32 0.0, %v1863
    %v1865 = vpop.f32.mrb[0].mxu0
    %v1866 = vadd.f32 0.0, %v1865
    %v1867 = vpop.f32.mrb[0].mxu0
    %v1868 = vadd.f32 0.0, %v1867
    %1869 = vdwg.mxu0
    %1870 = vmatprep.subr.bf16.mxu0 0
    %1871 = vmatpush1.bf16.msra.mxu0 %v703
    %1872 = vmatprep.subr.bf16.mxu0 0
    %1873 = vmatpush1.bf16.msra.mxu0 %v706
    %1874 = vmatprep.subr.bf16.mxu0 0
    %1875 = vmatpush1.bf16.msra.mxu0 %v709
    %1876 = vmatprep.subr.bf16.mxu0 0
    %1877 = vmatpush1.bf16.msra.mxu0 %v712
    %1878 = vmatprep.subr.bf16.mxu0 0
    %1879 = vmatpush1.bf16.msra.mxu0 %v715
    %1880 = vmatprep.subr.bf16.mxu0 0
    %1881 = vmatpush1.bf16.msra.mxu0 %v718
    %1882 = vmatprep.subr.bf16.mxu0 0
    %1883 = vmatpush1.bf16.msra.mxu0 %v721
    %1884 = vmatprep.subr.bf16.mxu0 0
    %1885 = vmatpush1.bf16.msra.mxu0 %v724
    %1886 = vmatprep.subr.bf16.mxu0 0
    %1887 = vmatpush1.bf16.msra.mxu0 0
    %1888 = vmatprep.subr.bf16.mxu0 0
    %1889 = vmatpush1.bf16.msra.mxu0 0
    %1890 = vmatprep.subr.bf16.mxu0 0
    %1891 = vmatpush1.bf16.msra.mxu0 0
    %1892 = vmatprep.subr.bf16.mxu0 0
    %1893 = vmatpush1.bf16.msra.mxu0 0
    %1894 = vmatprep.subr.bf16.mxu0 0
    %1895 = vmatpush1.bf16.msra.mxu0 0
    %1896 = vmatprep.subr.bf16.mxu0 0
    %1897 = vmatpush1.bf16.msra.mxu0 0
    %1898 = vmatprep.subr.bf16.mxu0 0
    %1899 = vmatpush1.bf16.msra.mxu0 0
    %1900 = vmatprep.subr.bf16.mxu0 0
    %1901 = vmatpush1.bf16.msra.mxu0 0
    %1902 = vmatprep.mubr.bf16.mxu0 0
    %1903 = vmatmul.mubr.bf16.gmra.mrb[0].mxu0 %v1826
    %v1904 = vpop.f32.mrb[0].mxu0
    %v1905 = vadd.f32 0.0, %v1904
    %v1906 = vpop.f32.mrb[0].mxu0
    %v1907 = vpop.f32.mrb[0].mxu0
    %v1908 = vadd.f32 0.0, %v1907
    %v1909 = vpop.f32.mrb[0].mxu0
    %1910 = vdwg.mxu0
    %v1911 = vadd.f32 %v1820, %v1862
    %v1912 = vadd.f32 %v1823, %v1866
    %v1913 = vxor.u32 %v1911, 2147483648
    %v1914 = vxor.u32 %v1912, 2147483648
    %v1915 = vmul.f32 %v1913, 1.442695
    %v1916 = vpow.pop %v1915
    %v1917 = vmul.f32 %v1914, 1.442695
    %v1918 = vpow.pop %v1917
    %v1919 = vadd.f32 %v1916, 1.0
    %v1920 = vadd.f32 %v1918, 1.0
    %v1921 = vrcp.pop %v1919
    %v1922 = vmul.f32 1.0, %v1921
    %v1923 = vrcp.pop %v1920
    %v1924 = vmul.f32 1.0, %v1923
    %v1925 = vadd.f32 %v1821, %v1864
    %v1926 = vadd.f32 %v1824, %v1868
    %v1927 = vxor.u32 %v1925, 2147483648
    %v1928 = vxor.u32 %v1926, 2147483648
    %v1929 = vmul.f32 %v1927, 1.442695
    %v1930 = vpow.pop %v1929
    %v1931 = vmul.f32 %v1928, 1.442695
    %v1932 = vpow.pop %v1931
    %v1933 = vadd.f32 %v1930, 1.0
    %v1934 = vadd.f32 %v1932, 1.0
    %v1935 = vrcp.pop %v1933
    %v1936 = vmul.f32 1.0, %v1935
    %v1937 = vrcp.pop %v1934
    %v1938 = vmul.f32 1.0, %v1937
    %v1939 = vadd.f32 %v1905, %v608
    %v1940 = vadd.f32 %v1908, %v608
    %v1941 = vmul.f32 %v1922, %v1939
    %v1942 = vmul.f32 %v1924, %v1940
    %v1943 = vadd.f32 %v1822, %v1941
    %v1944 = vadd.f32 %v1825, %v1942
    %v1945 = vtanh.pop %v1943
    %v1946 = vtanh.pop %v1944
    %v1947 = vsub.f32 1.0, %v1936
    %v1948 = vsub.f32 1.0, %v1938
    %v1949 = vmul.f32 %v1947, %v1945
    %v1950 = vmul.f32 %v1948, %v1946
    %v1951 = vmul.f32 %v1936, %v1815
    %v1952 = vmul.f32 %v1938, %v1816
    %v1953 = vadd.f32 %v1949, %v1951
    %v1954 = vadd.f32 %v1950, %v1952
    %vm1955 = vcmp.gt.s32.totalorder %v610, 7
    %vm1956 = vcmp.gt.s32.totalorder %v611, 7
    %v1957 = vsel %vm1955, 1, 0
    %v1958 = vsel %vm1956, 1, 0
    %1959 = vset.pattern.permute.xlu0 0
    %1960 = vperm.xlu0 %1959, %v1957
    %v1961 = vpop.permute.xlu0 %1960
    %1962 = vset.pattern.permute.xlu0 0
    %1963 = vperm.xlu0 %1962, %v1958
    %v1964 = vpop.permute.xlu0 %1963
    %vm1965 = vcmp.eq.s32.totalorder %v1961, 1
    %vm1966 = vcmp.eq.s32.totalorder %v1964, 1
    %v1967 = vsel %vm1965, %v1953, 0.0
    %v1968 = vsel %vm1966, %v1954, 0.0
    %v1969 = vsel %vm1965, %v1953, %v1815
    %v1970 = vsel %vm1966, %v1954, %v1816
    %v1971 = vadd.f32 %v1817, %v1967
    %v1972 = vadd.f32 %v1818, %v1968
    %v1973 = vcvt.s32.f32 %v610
    %v1974 = vcvt.s32.f32 %v611
    %v1975 = vmax.f32 %v1973, 1.0
    %v1976 = vmax.f32 %v1974, 1.0
    %1978 = vset.pattern.permute.xlu0 0
    %1979 = vperm.xlu0 %1978, %v1975
    %v1980 = vpop.permute.xlu0 %1979
    %1983 = vset.pattern.permute.xlu0 0
    %1984 = vperm.xlu0 %1983, %v1976
    %v1985 = vpop.permute.xlu0 %1984
    %v1987 = vrcp.pop %v1980
    %v1988 = vmul.f32 %v1971, %v1987
    %v1989 = vrcp.pop %v1985
    %v1990 = vmul.f32 %v1972, %v1989
    %1991 = vst [vmem:[#allocation10] sm:$0xff] %v1988
    %1992 = vst [vmem:[#allocation10 + $0x8] sm:$0xff] %v1990
    %1993 = vst [vmem:[#allocation9] sm:$0xff] %v1969
    %1994 = vst [vmem:[#allocation9 + $0x8] sm:$0xff] %v1970
    // Predicated region
    $region42: #{tpu_custom_call.1} parent=1 // pred_check
      _
    $region43: #{tpu_custom_call.1} parent=1 // pred_check_branch
      %1996 = sbr.rel (0) target = $region45
    $region44: #{tpu_custom_call.1} parent=1 // pred_region
      %s1998 = ssub.s32 256, 256
      %1999 = vsyncadd [#allocation5], %s1998
      %s2000 = sshll.u32 [#allocation9], 4
      %s2001 = int_to_ptr.vmem [resolvable:$true] %s2000
      %2006 = dma.vmem_to_hbm [thread:$0]  %s2001, 256, %s7, [#allocation5], 128, 128, 8
    $region45: #{tpu_custom_call.1} parent=1 // pred_fallthru
      _
    // Predicated region
    $region46: #{tpu_custom_call.1} parent=1 // pred_check
      _
    $region47: #{tpu_custom_call.1} parent=1 // pred_check_branch
      %2008 = sbr.rel (0) target = $region49
    $region48: #{tpu_custom_call.1} parent=1 // pred_region
      %s2010 = ssub.s32 256, 256
      %2011 = vsyncadd [#allocation11], %s2010
      %s2012 = sshll.u32 [#allocation10], 4
      %s2013 = int_to_ptr.vmem [resolvable:$true] %s2012
      %2018 = dma.vmem_to_hbm [thread:$0]  %s2013, 256, %s8, [#allocation11], 128, 128, 8
    $region49: #{tpu_custom_call.1} parent=1 // pred_fallthru
      _
    // Predicated region
    $region50: #{tpu_custom_call.1} parent=1 // pred_check
      _
    $region51: #{tpu_custom_call.1} parent=1 // pred_check_branch
      %2020 = sbr.rel (0) target = $region53
    $region52: #{tpu_custom_call.1} parent=1 // pred_region
      %2021 = dma.done [#allocation5], 256
    $region53: #{tpu_custom_call.1} parent=1 // pred_fallthru
      _
    // Predicated region
    $region54: #{tpu_custom_call.1} parent=1 // pred_check
      _
    $region55: #{tpu_custom_call.1} parent=1 // pred_check_branch
      %2023 = sbr.rel (0) target = $region57
    $region56: #{tpu_custom_call.1} parent=1 // pred_region
      %2024 = dma.done [#allocation11], 256
    $region57: #{tpu_custom_call.1} parent=1 // pred_fallthru
      _
    %2025 = vsyncpa [#allocation4], 1
    %2026 = vsyncpa [#allocation7], 1
    %2027 = vsyncpa [#allocation5], 1
    %2028 = vsyncpa [#allocation11], 1

</llo_original>
